<compile_context>
chip_gen: v5e
topology: v5e:2x2
jax: 0.10.0
libtpu: 0.0.40
codegen_flags: <defaults>
</compile_context>

<pallas_src>
import functools

import jax
import jax.numpy as jnp
from jax import lax
from jax.experimental import pallas as pl
from jax.experimental.pallas import tpu as pltpu


# -----------------------------------------------------------------------------
# Helpers
# -----------------------------------------------------------------------------
def _vmem_capacity_bytes():
    try:
        return int(pltpu.get_tpu_info().vmem_capacity_bytes)
    except Exception:
        return 64 << 20          # conservative default (v7x per-TC VMEM)


def _pick_tq(hw_pad, n_batch):
    """Destination-pixel tile: multiple of 128, <= 512, dividing hw_pad."""
    tq = 128
    for cand in (512, 256):
        if hw_pad % cand == 0:
            tq = cand
            break
    # Guarantee >= 2 grid steps even at N == 1 (v7x megacore).
    while n_batch * (hw_pad // tq) < 2 and tq > 128:
        tq //= 2
    return tq


def _pick_tk(hw_pad):
    """Source-pixel tile for the matmul fallback: (TK, HW) f32 S <= ~8 MiB."""
    budget = 8 << 20
    for cand in (1024, 512, 256):
        if hw_pad % cand == 0 and cand * hw_pad * 4 <= budget:
            return cand
    return 128


def _sample_coords(flow_x, flow_y, base_x, base_y, H, W):
    """Bilinear corner flat indices (clamped) + zero-padding-masked weights.

    All inputs/outputs are (1, T).  Returns ((idx, w) x 4 corners).
    """
    sx = 2.0 / (W - 1.0) if W > 1 else 2.0
    sy = 2.0 / (H - 1.0) if H > 1 else 2.0
    # backwarp flow normalization, then grid_sample unnormalize
    # (align_corners=False, the PyTorch default).
    x = ((base_x + flow_x * sx + 1.0) * W - 1.0) * 0.5
    y = ((base_y + flow_y * sy + 1.0) * H - 1.0) * 0.5

    x0f = jnp.floor(x)
    y0f = jnp.floor(y)
    tx = x - x0f
    ty = y - y0f
    one_m_tx = 1.0 - tx
    one_m_ty = 1.0 - ty
    x0 = x0f.astype(jnp.int32)
    y0 = y0f.astype(jnp.int32)
    x1 = x0 + 1
    y1 = y0 + 1

    vx0 = (x0 >= 0) & (x0 < W)
    vx1 = (x1 >= 0) & (x1 < W)
    vy0 = (y0 >= 0) & (y0 < H)
    vy1 = (y1 >= 0) & (y1 < H)

    zero = jnp.zeros_like(tx)
    w00 = jnp.where(vx0 & vy0, one_m_tx * one_m_ty, zero)
    w01 = jnp.where(vx1 & vy0, tx * one_m_ty, zero)
    w10 = jnp.where(vx0 & vy1, one_m_tx * ty, zero)
    w11 = jnp.where(vx1 & vy1, tx * ty, zero)

    # Clamp only for addressing; out-of-bounds corners already carry weight 0.
    x0c = jnp.clip(x0, 0, W - 1)
    x1c = jnp.clip(x1, 0, W - 1)
    y0c = jnp.clip(y0, 0, H - 1)
    y1c = jnp.clip(y1, 0, H - 1)
    return ((y0c * W + x0c, w00), (y0c * W + x1c, w01),
            (y1c * W + x0c, w10), (y1c * W + x1c, w11))


# -----------------------------------------------------------------------------
# Primary kernel: 4-corner bilinear lane gather, O(C*HW) work.
# Grid = (batch, dest-pixel tile); `second` stays VMEM-resident across tiles.
# -----------------------------------------------------------------------------
def _metric_gather_kernel(first_ref, second_ref, flow_ref, base_ref, alpha_ref,
                          out_ref, *, H, W, C):
    TQ = out_ref.shape[-1]
    corners = _sample_coords(flow_ref[0, 0:1, :], flow_ref[0, 1:2, :],
                             base_ref[0, 0:1, :], base_ref[0, 1:2, :], H, W)

    second = second_ref[0]                      # (C, HW_pad), resident in VMEM

    # Accumulate the four bilinear corners one at a time (narrow live ranges).
    warped = None
    for idx, wgt in corners:
        idx_b = jnp.broadcast_to(idx, (C, TQ))
        vals = jnp.take_along_axis(second, idx_b, axis=1,
                                   mode="promise_in_bounds")    # (C, TQ)
        term = wgt * vals
        warped = term if warped is None else warped + term

    diff = jnp.abs(first_ref[0] - warped)       # (C, TQ)
    # Channel reduction on the MXU (the XLU is busy with the gathers).
    # alpha * (1/C) was already folded into alpha_ref by the wrapper.
    ones_row = jnp.ones((1, C), jnp.float32)
    red = jnp.dot(ones_row, diff, preferred_element_type=jnp.float32)  # (1, TQ)
    out_ref[0] = alpha_ref[0, 0] * red


def _metric_gather_call(first, second, flow, base, alpha_s, *, N, C, H, W,
                        HW_pad, TQ):
    kernel = functools.partial(_metric_gather_kernel, H=H, W=W, C=C)

    need = 4 * (2 * C * HW_pad          # resident second (double-buffered)
                + 2 * C * TQ            # first tile (x2)
                + 2 * 2 * TQ * 2        # flow + base tiles (x2)
                + 2 * TQ)               # output tile (x2)
    cap = _vmem_capacity_bytes()
    vmem_limit = int(min(max(2 * need, 16 << 20), int(0.75 * cap)))

    cost = pl.CostEstimate(
        flops=int(N * HW_pad * (12 * C + 48)),
        transcendentals=0,
        bytes_accessed=int(4 * (N * HW_pad * (2 * C + 3) + 2 * HW_pad)),
    )

    return pl.pallas_call(
        kernel,
        out_shape=jax.ShapeDtypeStruct((N, 1, HW_pad), jnp.float32),
        grid_spec=pltpu.PrefetchScalarGridSpec(
            num_scalar_prefetch=0,
            grid=(N, HW_pad // TQ),
            in_specs=[
                pl.BlockSpec((1, C, TQ), lambda b, q: (b, 0, q)),       # first tile
                pl.BlockSpec((1, C, HW_pad), lambda b, q: (b, 0, 0)),   # second (resident)
                pl.BlockSpec((1, 2, TQ), lambda b, q: (b, 0, q)),       # flow tile
                pl.BlockSpec((1, 2, TQ), lambda b, q: (0, 0, q)),       # base grid tile
                pl.BlockSpec(memory_space=pltpu.MemorySpace.SMEM),      # alpha / C
            ],
            out_specs=pl.BlockSpec((1, 1, TQ), lambda b, q: (b, 0, q)),
        ),
        compiler_params=pltpu.CompilerParams(
            dimension_semantics=("parallel", "parallel"),
            vmem_limit_bytes=vmem_limit,
        ),
        cost_estimate=cost,
    )(first, second, flow, base, alpha_s)


# -----------------------------------------------------------------------------
# Fallback kernel: one-hot matmul tiled along the source-pixel axis.  Only
# used if the gather lowering is rejected by the local toolchain (probed once
# per shape at build time, not per call).
# -----------------------------------------------------------------------------
def _metric_matmul_kernel(first_ref, second_ref, flow_ref, base_ref, alpha_ref,
                          out_ref, warp_acc, idx_sc, w_sc, *, H, W, C, TK):
    HW = out_ref.shape[-1]
    k = pl.program_id(1)

    @pl.when(k == 0)
    def _():
        # Hoisted coordinate math: computed once per batch, reused every k.
        (i00, w00), (_, w01), (_, w10), (_, w11) = _sample_coords(
            flow_ref[0, 0:1, :], flow_ref[0, 1:2, :],
            base_ref[0, 0:1, :], base_ref[0, 1:2, :], H, W)
        idx_sc[...] = i00
        w_sc[0:1, :] = w00
        w_sc[1:2, :] = w01
        w_sc[2:3, :] = w10
        w_sc[3:4, :] = w11

    # Delta trick: the four corners sit at flat offsets {0, 1, W, W+1} from
    # idx00 = y0*W + x0 (invalid corners already carry weight 0).
    idx00 = idx_sc[...]
    q = lax.broadcasted_iota(jnp.int32, (TK, HW), 0) + k * TK
    d = q - idx00
    zeros = jnp.zeros((TK, HW), jnp.float32)
    s = jnp.where(d == 0, w_sc[0:1, :], zeros)
    s = s + jnp.where(d == 1, w_sc[1:2, :], zeros)
    s = s + jnp.where(d == W, w_sc[2:3, :], zeros)
    s = s + jnp.where(d == W + 1, w_sc[3:4, :], zeros)

    contrib = jnp.dot(second_ref[0], s, preferred_element_type=jnp.float32)

    @pl.when(k == 0)
    def _():
        warp_acc[...] = contrib            # no separate zero-init pass

    @pl.when(k > 0)
    def _():
        warp_acc[...] += contrib

    @pl.when(k == pl.num_programs(1) - 1)
    def _():
        diff = jnp.abs(first_ref[0] - warp_acc[...])
        red = jnp.sum(diff, axis=0, keepdims=True)
        out_ref[0] = alpha_ref[0, 0] * red


def _metric_matmul_call(first, second, flow, base, alpha_s, *, N, C, H, W,
                        HW_pad):
    TK = _pick_tk(HW_pad)
    kernel = functools.partial(_metric_matmul_kernel, H=H, W=W, C=C, TK=TK)

    need = (4 * (2 * C * HW_pad + 2 * C * TK + 2 * 2 * HW_pad * 2 + 2 * HW_pad)
            + 4 * (C * HW_pad + HW_pad + 4 * HW_pad)      # scratch
            + 4 * 3 * TK * HW_pad)                        # S temporaries
    cap = _vmem_capacity_bytes()
    vmem_limit = int(min(max(2 * need, 16 << 20), int(0.75 * cap)))

    cost = pl.CostEstimate(
        flops=int(2 * N * (C + 4) * HW_pad * HW_pad),
        transcendentals=0,
        bytes_accessed=int(4 * N * HW_pad * (2 * C + 3)),
    )

    return pl.pallas_call(
        kernel,
        out_shape=jax.ShapeDtypeStruct((N, 1, HW_pad), jnp.float32),
        grid_spec=pltpu.PrefetchScalarGridSpec(
            num_scalar_prefetch=0,
            grid=(N, HW_pad // TK),
            in_specs=[
                pl.BlockSpec((1, C, HW_pad), lambda b, k: (b, 0, 0)),   # first (resident)
                pl.BlockSpec((1, C, TK), lambda b, k: (b, 0, k)),       # second tile
                pl.BlockSpec((1, 2, HW_pad), lambda b, k: (b, 0, 0)),   # flow
                pl.BlockSpec((1, 2, HW_pad), lambda b, k: (0, 0, 0)),   # base grid
                pl.BlockSpec(memory_space=pltpu.MemorySpace.SMEM),      # alpha / C
            ],
            out_specs=pl.BlockSpec((1, 1, HW_pad), lambda b, k: (b, 0, 0)),
            scratch_shapes=[
                pltpu.VMEM((C, HW_pad), jnp.float32),   # warp accumulator
                pltpu.VMEM((1, HW_pad), jnp.int32),     # hoisted idx00
                pltpu.VMEM((4, HW_pad), jnp.float32),   # hoisted corner weights
            ],
        ),
        compiler_params=pltpu.CompilerParams(
            dimension_semantics=("parallel", "arbitrary"),
            vmem_limit_bytes=vmem_limit,
        ),
        cost_estimate=cost,
    )(first, second, flow, base, alpha_s)


# -----------------------------------------------------------------------------
# Path selection: compile the gather kernel once per shape; fall back to the
# matmul kernel only if that lowering is rejected.  Cached, so metric_forward
# itself has no per-call sync or exception handling.
# -----------------------------------------------------------------------------
_PATH_CACHE = {}


def _use_gather_path(N, C, H, W, HW_pad, TQ):
    key = (N, C, H, W)
    ok = _PATH_CACHE.get(key)
    if ok is None:
        try:
            z_img = jnp.zeros((N, C, HW_pad), jnp.float32)
            z_fl = jnp.zeros((N, 2, HW_pad), jnp.float32)
            z_bs = jnp.zeros((1, 2, HW_pad), jnp.float32)
            z_al = jnp.zeros((1, 1), jnp.float32)
            jax.block_until_ready(_metric_gather_call(
                z_img, z_img, z_fl, z_bs, z_al,
                N=N, C=C, H=H, W=W, HW_pad=HW_pad, TQ=TQ))
            ok = True
        except Exception:
            ok = False
        _PATH_CACHE[key] = ok
    return ok


def metric_forward(ten_first, ten_second, ten_flow, alpha):
    """Inputs in NCHW (PyTorch convention); returns (N, 1, H, W)."""
    N, C, H, W = ten_first.shape
    HW = H * W
    HW_pad = ((HW + 127) // 128) * 128      # lane-dense blocks / stores

    def flat(x, ch):
        x = x.reshape(N, ch, HW).astype(jnp.float32)
        if HW_pad != HW:
            x = jnp.pad(x, ((0, 0), (0, 0), (0, HW_pad - HW)))
        return x

    first = flat(ten_first, C)
    second = flat(ten_second, C)
    flow = flat(ten_flow, 2)

    # alpha * (1/C) folded into one SMEM scalar.
    alpha_s = (alpha.reshape(1, 1) * (1.0 / C)).astype(jnp.float32)

    # Batch-invariant base grid (torch.linspace(-1, 1, .) of backwarp), hoisted
    # out of the kernel.
    gx = -1.0 + 2.0 * jnp.arange(W, dtype=jnp.float32) / max(W - 1.0, 1.0)
    gy = -1.0 + 2.0 * jnp.arange(H, dtype=jnp.float32) / max(H - 1.0, 1.0)
    base = jnp.stack([jnp.tile(gx, H), jnp.repeat(gy, W)])[None]   # (1, 2, HW)
    if HW_pad != HW:
        base = jnp.pad(base, ((0, 0), (0, 0), (0, HW_pad - HW)))

    TQ = _pick_tq(HW_pad, N)

    if _use_gather_path(N, C, H, W, HW_pad, TQ):
        out = _metric_gather_call(first, second, flow, base, alpha_s,
                                  N=N, C=C, H=H, W=W, HW_pad=HW_pad, TQ=TQ)
    else:
        out = _metric_matmul_call(first, second, flow, base, alpha_s,
                                  N=N, C=C, H=H, W=W, HW_pad=HW_pad)

    if HW_pad != HW:
        out = out[:, :, :HW]
    return out.reshape(N, 1, H, W)


# -----------------------------------------------------------------------------
# Pure-JAX reference (same grid_sample semantics) for sanity checking.
# -----------------------------------------------------------------------------
def _reference_forward(ten_first, ten_second, ten_flow, alpha):
    N, C, H, W = ten_first.shape
    HW = H * W
    wi = jnp.arange(W, dtype=jnp.float32)[None, None, :]
    hi = jnp.arange(H, dtype=jnp.float32)[None, :, None]
    gx = -1.0 + 2.0 * wi / (W - 1.0)
    gy = -1.0 + 2.0 * hi / (H - 1.0)
    fx = ten_flow[:, 0, :, :] / ((W - 1.0) / 2.0)
    fy = ten_flow[:, 1, :, :] / ((H - 1.0) / 2.0)
    x = ((gx + fx + 1.0) * W - 1.0) * 0.5
    y = ((gy + fy + 1.0) * H - 1.0) * 0.5
    x0 = jnp.floor(x); y0 = jnp.floor(y)
    tx = x - x0; ty = y - y0
    x0 = x0.astype(jnp.int32); y0 = y0.astype(jnp.int32)
    x1 = x0 + 1; y1 = y0 + 1
    sec = ten_second.reshape(N, C, HW)

    def gather(yi, xi, w):
        valid = (xi >= 0) & (xi < W) & (yi >= 0) & (yi < H)
        wv = jnp.where(valid, w, 0.0)
        idx = jnp.clip(yi, 0, H - 1) * W + jnp.clip(xi, 0, W - 1)
        vals = jnp.take_along_axis(sec, idx.reshape(N, 1, HW), axis=2)
        return wv.reshape(N, 1, HW) * vals

    warped = (gather(y0, x0, (1 - tx) * (1 - ty)) + gather(y0, x1, tx * (1 - ty))
              + gather(y1, x0, (1 - tx) * ty) + gather(y1, x1, tx * ty))
    warped = warped.reshape(N, C, H, W)
    diff = jnp.abs(ten_first - warped).mean(axis=1, keepdims=True)
    return alpha.reshape(1, 1, 1, 1) * diff


if __name__ == "__main__":
    key = jax.random.PRNGKey(0)
    k1, k2, k3 = jax.random.split(key, 3)

    N, C, H, W = 2, 4, 16, 16
    ten_first = jax.random.normal(k1, (N, C, H, W), dtype=jnp.float32)
    ten_second = jax.random.normal(k2, (N, C, H, W), dtype=jnp.float32)
    ten_flow = 3.0 * jax.random.normal(k3, (N, 2, H, W), dtype=jnp.float32)

    # nn.Parameter(-torch.ones(1, 1, 1, 1)) — deterministic init
    alpha = -jnp.ones((1, 1, 1, 1), dtype=jnp.float32)

    out = metric_forward(ten_first, ten_second, ten_flow, alpha)
    out = jax.block_until_ready(out)

    ref = _reference_forward(ten_first, ten_second, ten_flow, alpha)
    assert out.shape == (N, 1, H, W)
    assert jnp.allclose(out, ref, atol=1e-5, rtol=1e-5)

    print("KERNEL_OK")
</pallas_src>

<mosaic_0001>
module attributes {stable_mosaic.version = 11 : i64} {
  func.func @_metric_gather_kernel(%arg0: i32, %arg1: i32, %arg2: memref<1x4x256xf32, #tpu.memory_space<vmem>>, %arg3: memref<1x4x256xf32, #tpu.memory_space<vmem>>, %arg4: memref<1x2x256xf32, #tpu.memory_space<vmem>>, %arg5: memref<1x2x256xf32, #tpu.memory_space<vmem>>, %arg6: memref<1x1xf32, #tpu.memory_space<smem>>, %arg7: memref<1x1x256xf32, #tpu.memory_space<vmem>>) attributes {dimension_semantics = [#tpu.dimension_semantics<parallel>, #tpu.dimension_semantics<parallel>], iteration_bounds = array<i64: 2, 1>, scalar_prefetch = 0 : i64, scratch_operands = 0 : i64, tpu.core_type = #tpu.core_type<tc>, window_params = [{transform_indices = @transform_0, window_bounds = array<i64: 1, 4, 256>}, {transform_indices = @transform_1, window_bounds = array<i64: 1, 4, 256>}, {transform_indices = @transform_2, window_bounds = array<i64: 1, 2, 256>}, {transform_indices = @transform_3, window_bounds = array<i64: 1, 2, 256>}, {transform_indices = @transform_4, window_bounds = array<i64: 1, 1>}, {transform_indices = @transform_5, window_bounds = array<i64: 1, 1, 256>}]} {
    %c0 = arith.constant 0 : index
    %c0_0 = arith.constant 0 : index
    %c0_1 = arith.constant 0 : index
    %0 = vector.load %arg4[%c0, %c0_0, %c0_1] : memref<1x2x256xf32, #tpu.memory_space<vmem>>, vector<1x1x256xf32>
    %1 = vector.shape_cast %0 : vector<1x1x256xf32> to vector<1x256xf32>
    %c0_2 = arith.constant 0 : index
    %c1 = arith.constant 1 : index
    %c0_3 = arith.constant 0 : index
    %2 = vector.load %arg4[%c0_2, %c1, %c0_3] : memref<1x2x256xf32, #tpu.memory_space<vmem>>, vector<1x1x256xf32>
    %3 = vector.shape_cast %2 : vector<1x1x256xf32> to vector<1x256xf32>
    %c0_4 = arith.constant 0 : index
    %c0_5 = arith.constant 0 : index
    %c0_6 = arith.constant 0 : index
    %4 = vector.load %arg5[%c0_4, %c0_5, %c0_6] : memref<1x2x256xf32, #tpu.memory_space<vmem>>, vector<1x1x256xf32>
    %5 = vector.shape_cast %4 : vector<1x1x256xf32> to vector<1x256xf32>
    %c0_7 = arith.constant 0 : index
    %c1_8 = arith.constant 1 : index
    %c0_9 = arith.constant 0 : index
    %6 = vector.load %arg5[%c0_7, %c1_8, %c0_9] : memref<1x2x256xf32, #tpu.memory_space<vmem>>, vector<1x1x256xf32>
    %7 = vector.shape_cast %6 : vector<1x1x256xf32> to vector<1x256xf32>
    %cst = arith.constant 0.13333334 : f32
    %8 = vector.broadcast %cst : f32 to vector<1x256xf32>
    %9 = arith.mulf %1, %8 : vector<1x256xf32>
    %10 = arith.addf %5, %9 : vector<1x256xf32>
    %cst_10 = arith.constant 1.000000e+00 : f32
    %11 = vector.broadcast %cst_10 : f32 to vector<1x256xf32>
    %12 = arith.addf %10, %11 : vector<1x256xf32>
    %cst_11 = arith.constant 1.600000e+01 : f32
    %13 = vector.broadcast %cst_11 : f32 to vector<1x256xf32>
    %14 = arith.mulf %12, %13 : vector<1x256xf32>
    %cst_12 = arith.constant 1.000000e+00 : f32
    %15 = vector.broadcast %cst_12 : f32 to vector<1x256xf32>
    %16 = arith.subf %14, %15 : vector<1x256xf32>
    %cst_13 = arith.constant 5.000000e-01 : f32
    %17 = vector.broadcast %cst_13 : f32 to vector<1x256xf32>
    %18 = arith.mulf %16, %17 : vector<1x256xf32>
    %cst_14 = arith.constant 0.13333334 : f32
    %19 = vector.broadcast %cst_14 : f32 to vector<1x256xf32>
    %20 = arith.mulf %3, %19 : vector<1x256xf32>
    %21 = arith.addf %7, %20 : vector<1x256xf32>
    %cst_15 = arith.constant 1.000000e+00 : f32
    %22 = vector.broadcast %cst_15 : f32 to vector<1x256xf32>
    %23 = arith.addf %21, %22 : vector<1x256xf32>
    %cst_16 = arith.constant 1.600000e+01 : f32
    %24 = vector.broadcast %cst_16 : f32 to vector<1x256xf32>
    %25 = arith.mulf %23, %24 : vector<1x256xf32>
    %cst_17 = arith.constant 1.000000e+00 : f32
    %26 = vector.broadcast %cst_17 : f32 to vector<1x256xf32>
    %27 = arith.subf %25, %26 : vector<1x256xf32>
    %cst_18 = arith.constant 5.000000e-01 : f32
    %28 = vector.broadcast %cst_18 : f32 to vector<1x256xf32>
    %29 = arith.mulf %27, %28 : vector<1x256xf32>
    %30 = math.floor %18 : vector<1x256xf32>
    %31 = math.floor %29 : vector<1x256xf32>
    %32 = arith.subf %18, %30 : vector<1x256xf32>
    %33 = arith.subf %29, %31 : vector<1x256xf32>
    %cst_19 = arith.constant 1.000000e+00 : f32
    %34 = vector.broadcast %cst_19 : f32 to vector<1x256xf32>
    %35 = arith.subf %34, %32 : vector<1x256xf32>
    %cst_20 = arith.constant 1.000000e+00 : f32
    %36 = vector.broadcast %cst_20 : f32 to vector<1x256xf32>
    %37 = arith.subf %36, %33 : vector<1x256xf32>
    %38 = arith.fptosi %30 : vector<1x256xf32> to vector<1x256xi32>
    %39 = arith.fptosi %31 : vector<1x256xf32> to vector<1x256xi32>
    %c1_i32 = arith.constant 1 : i32
    %40 = vector.broadcast %c1_i32 : i32 to vector<1x256xi32>
    %41 = arith.addi %38, %40 : vector<1x256xi32>
    %c1_i32_21 = arith.constant 1 : i32
    %42 = vector.broadcast %c1_i32_21 : i32 to vector<1x256xi32>
    %43 = arith.addi %39, %42 : vector<1x256xi32>
    %c0_i32 = arith.constant 0 : i32
    %44 = vector.broadcast %c0_i32 : i32 to vector<1x256xi32>
    %45 = arith.cmpi sge, %38, %44 : vector<1x256xi32>
    %c16_i32 = arith.constant 16 : i32
    %46 = vector.broadcast %c16_i32 : i32 to vector<1x256xi32>
    %47 = arith.cmpi slt, %38, %46 : vector<1x256xi32>
    %48 = arith.andi %45, %47 : vector<1x256xi1>
    %c0_i32_22 = arith.constant 0 : i32
    %49 = vector.broadcast %c0_i32_22 : i32 to vector<1x256xi32>
    %50 = arith.cmpi sge, %41, %49 : vector<1x256xi32>
    %c16_i32_23 = arith.constant 16 : i32
    %51 = vector.broadcast %c16_i32_23 : i32 to vector<1x256xi32>
    %52 = arith.cmpi slt, %41, %51 : vector<1x256xi32>
    %53 = arith.andi %50, %52 : vector<1x256xi1>
    %c0_i32_24 = arith.constant 0 : i32
    %54 = vector.broadcast %c0_i32_24 : i32 to vector<1x256xi32>
    %55 = arith.cmpi sge, %39, %54 : vector<1x256xi32>
    %c16_i32_25 = arith.constant 16 : i32
    %56 = vector.broadcast %c16_i32_25 : i32 to vector<1x256xi32>
    %57 = arith.cmpi slt, %39, %56 : vector<1x256xi32>
    %58 = arith.andi %55, %57 : vector<1x256xi1>
    %c0_i32_26 = arith.constant 0 : i32
    %59 = vector.broadcast %c0_i32_26 : i32 to vector<1x256xi32>
    %60 = arith.cmpi sge, %43, %59 : vector<1x256xi32>
    %c16_i32_27 = arith.constant 16 : i32
    %61 = vector.broadcast %c16_i32_27 : i32 to vector<1x256xi32>
    %62 = arith.cmpi slt, %43, %61 : vector<1x256xi32>
    %63 = arith.andi %60, %62 : vector<1x256xi1>
    %cst_28 = arith.constant 0.000000e+00 : f32
    %64 = vector.broadcast %cst_28 : f32 to vector<1x256xf32>
    %65 = arith.andi %48, %58 : vector<1x256xi1>
    %66 = arith.mulf %35, %37 : vector<1x256xf32>
    %67 = arith.select %65, %66, %64 : vector<1x256xi1>, vector<1x256xf32>
    %68 = arith.andi %53, %58 : vector<1x256xi1>
    %69 = arith.mulf %32, %37 : vector<1x256xf32>
    %70 = arith.select %68, %69, %64 : vector<1x256xi1>, vector<1x256xf32>
    %71 = arith.andi %48, %63 : vector<1x256xi1>
    %72 = arith.mulf %35, %33 : vector<1x256xf32>
    %73 = arith.select %71, %72, %64 : vector<1x256xi1>, vector<1x256xf32>
    %74 = arith.andi %53, %63 : vector<1x256xi1>
    %75 = arith.mulf %32, %33 : vector<1x256xf32>
    %76 = arith.select %74, %75, %64 : vector<1x256xi1>, vector<1x256xf32>
    %c0_i32_29 = arith.constant 0 : i32
    %c15_i32 = arith.constant 15 : i32
    %77 = vector.broadcast %c0_i32_29 : i32 to vector<1x256xi32>
    %78 = arith.maxsi %77, %38 : vector<1x256xi32>
    %79 = vector.broadcast %c15_i32 : i32 to vector<1x256xi32>
    %80 = arith.minsi %79, %78 : vector<1x256xi32>
    %c0_i32_30 = arith.constant 0 : i32
    %c15_i32_31 = arith.constant 15 : i32
    %81 = vector.broadcast %c0_i32_30 : i32 to vector<1x256xi32>
    %82 = arith.maxsi %81, %41 : vector<1x256xi32>
    %83 = vector.broadcast %c15_i32_31 : i32 to vector<1x256xi32>
    %84 = arith.minsi %83, %82 : vector<1x256xi32>
    %c0_i32_32 = arith.constant 0 : i32
    %c15_i32_33 = arith.constant 15 : i32
    %85 = vector.broadcast %c0_i32_32 : i32 to vector<1x256xi32>
    %86 = arith.maxsi %85, %39 : vector<1x256xi32>
    %87 = vector.broadcast %c15_i32_33 : i32 to vector<1x256xi32>
    %88 = arith.minsi %87, %86 : vector<1x256xi32>
    %c0_i32_34 = arith.constant 0 : i32
    %c15_i32_35 = arith.constant 15 : i32
    %89 = vector.broadcast %c0_i32_34 : i32 to vector<1x256xi32>
    %90 = arith.maxsi %89, %43 : vector<1x256xi32>
    %91 = vector.broadcast %c15_i32_35 : i32 to vector<1x256xi32>
    %92 = arith.minsi %91, %90 : vector<1x256xi32>
    %c16_i32_36 = arith.constant 16 : i32
    %93 = vector.broadcast %c16_i32_36 : i32 to vector<1x256xi32>
    %94 = arith.muli %88, %93 : vector<1x256xi32>
    %95 = arith.addi %94, %80 : vector<1x256xi32>
    %c16_i32_37 = arith.constant 16 : i32
    %96 = vector.broadcast %c16_i32_37 : i32 to vector<1x256xi32>
    %97 = arith.muli %88, %96 : vector<1x256xi32>
    %98 = arith.addi %97, %84 : vector<1x256xi32>
    %c16_i32_38 = arith.constant 16 : i32
    %99 = vector.broadcast %c16_i32_38 : i32 to vector<1x256xi32>
    %100 = arith.muli %92, %99 : vector<1x256xi32>
    %101 = arith.addi %100, %80 : vector<1x256xi32>
    %c16_i32_39 = arith.constant 16 : i32
    %102 = vector.broadcast %c16_i32_39 : i32 to vector<1x256xi32>
    %103 = arith.muli %92, %102 : vector<1x256xi32>
    %104 = arith.addi %103, %84 : vector<1x256xi32>
    %c0_40 = arith.constant 0 : index
    %c0_41 = arith.constant 0 : index
    %c0_42 = arith.constant 0 : index
    %105 = vector.load %arg3[%c0_40, %c0_41, %c0_42] : memref<1x4x256xf32, #tpu.memory_space<vmem>>, vector<1x4x256xf32>
    %106 = vector.shape_cast %105 : vector<1x4x256xf32> to vector<4x256xf32>
    %107 = vector.shape_cast %95 : vector<1x256xi32> to vector<1x256xi32>
    %108 = vector.broadcast %107 : vector<1x256xi32> to vector<4x256xi32>
    %109 = vector.shape_cast %108 : vector<4x256xi32> to vector<4x256x1xi32>
    %110 = vector.shape_cast %109 : vector<4x256x1xi32> to vector<4x256xi32>
    %111 = tpu.dynamic_gather %106[%110] in [1] : vector<4x256xf32>, vector<4x256xi32> -> vector<4x256xf32>
    %112 = vector.broadcast %67 : vector<1x256xf32> to vector<4x256xf32>
    %113 = arith.mulf %112, %111 : vector<4x256xf32>
    %114 = vector.shape_cast %98 : vector<1x256xi32> to vector<1x256xi32>
    %115 = vector.broadcast %114 : vector<1x256xi32> to vector<4x256xi32>
    %116 = vector.shape_cast %115 : vector<4x256xi32> to vector<4x256x1xi32>
    %117 = vector.shape_cast %116 : vector<4x256x1xi32> to vector<4x256xi32>
    %118 = tpu.dynamic_gather %106[%117] in [1] : vector<4x256xf32>, vector<4x256xi32> -> vector<4x256xf32>
    %119 = vector.broadcast %70 : vector<1x256xf32> to vector<4x256xf32>
    %120 = arith.mulf %119, %118 : vector<4x256xf32>
    %121 = arith.addf %113, %120 : vector<4x256xf32>
    %122 = vector.shape_cast %101 : vector<1x256xi32> to vector<1x256xi32>
    %123 = vector.broadcast %122 : vector<1x256xi32> to vector<4x256xi32>
    %124 = vector.shape_cast %123 : vector<4x256xi32> to vector<4x256x1xi32>
    %125 = vector.shape_cast %124 : vector<4x256x1xi32> to vector<4x256xi32>
    %126 = tpu.dynamic_gather %106[%125] in [1] : vector<4x256xf32>, vector<4x256xi32> -> vector<4x256xf32>
    %127 = vector.broadcast %73 : vector<1x256xf32> to vector<4x256xf32>
    %128 = arith.mulf %127, %126 : vector<4x256xf32>
    %129 = arith.addf %121, %128 : vector<4x256xf32>
    %130 = vector.shape_cast %104 : vector<1x256xi32> to vector<1x256xi32>
    %131 = vector.broadcast %130 : vector<1x256xi32> to vector<4x256xi32>
    %132 = vector.shape_cast %131 : vector<4x256xi32> to vector<4x256x1xi32>
    %133 = vector.shape_cast %132 : vector<4x256x1xi32> to vector<4x256xi32>
    %134 = tpu.dynamic_gather %106[%133] in [1] : vector<4x256xf32>, vector<4x256xi32> -> vector<4x256xf32>
    %135 = vector.broadcast %76 : vector<1x256xf32> to vector<4x256xf32>
    %136 = arith.mulf %135, %134 : vector<4x256xf32>
    %137 = arith.addf %129, %136 : vector<4x256xf32>
    %c0_43 = arith.constant 0 : index
    %c0_44 = arith.constant 0 : index
    %c0_45 = arith.constant 0 : index
    %138 = vector.load %arg2[%c0_43, %c0_44, %c0_45] : memref<1x4x256xf32, #tpu.memory_space<vmem>>, vector<1x4x256xf32>
    %139 = vector.shape_cast %138 : vector<1x4x256xf32> to vector<4x256xf32>
    %140 = arith.subf %139, %137 : vector<4x256xf32>
    %141 = math.absf %140 : vector<4x256xf32>
    %cst_46 = arith.constant 1.000000e+00 : f32
    %142 = vector.broadcast %cst_46 : f32 to vector<1x4xf32>
    %cst_47 = arith.constant dense<0.000000e+00> : vector<1x256xf32>
    %143 = tpu.matmul %142, %141, %cst_47 {dimension_numbers = #tpu.dot_dimension_numbers<[1], [0], [0], [1], [0, 0, 1, 1], [], []>} : vector<1x4xf32>, vector<4x256xf32>, vector<1x256xf32> -> vector<1x256xf32>
    %c0_48 = arith.constant 0 : index
    %c0_49 = arith.constant 0 : index
    %144 = memref.load %arg6[%c0_48, %c0_49] : memref<1x1xf32, #tpu.memory_space<smem>>
    %145 = vector.broadcast %144 : f32 to vector<1x256xf32>
    %146 = arith.mulf %145, %143 : vector<1x256xf32>
    %c0_50 = arith.constant 0 : index
    %c0_51 = arith.constant 0 : index
    %c0_52 = arith.constant 0 : index
    %147 = vector.load %arg7[%c0_50, %c0_51, %c0_52] : memref<1x1x256xf32, #tpu.memory_space<vmem>>, vector<1x1x256xf32>
    %148 = vector.shape_cast %147 : vector<1x1x256xf32> to vector<1x256xf32>
    %149 = vector.shape_cast %146 : vector<1x256xf32> to vector<1x1x256xf32>
    tpu.vector_store %arg7[%c0_50, %c0_51, %c0_52], %149 {strides = array<i32>} : memref<1x1x256xf32, #tpu.memory_space<vmem>>, vector<1x1x256xf32>,
    return
  }
  func.func @transform_0(%arg0: i32, %arg1: i32) -> (i32, i32, i32) {
    %c0_i32 = arith.constant 0 : i32
    %c0_i32_0 = arith.constant 0 : i32
    return %arg0, %c0_i32, %arg1 : i32, i32, i32
  }
  func.func @transform_1(%arg0: i32, %arg1: i32) -> (i32, i32, i32) {
    %c0_i32 = arith.constant 0 : i32
    %c0_i32_0 = arith.constant 0 : i32
    %c0_i32_1 = arith.constant 0 : i32
    return %arg0, %c0_i32, %c0_i32_0 : i32, i32, i32
  }
  func.func @transform_2(%arg0: i32, %arg1: i32) -> (i32, i32, i32) {
    %c0_i32 = arith.constant 0 : i32
    %c0_i32_0 = arith.constant 0 : i32
    return %arg0, %c0_i32, %arg1 : i32, i32, i32
  }
  func.func @transform_3(%arg0: i32, %arg1: i32) -> (i32, i32, i32) {
    %c0_i32 = arith.constant 0 : i32
    %c0_i32_0 = arith.constant 0 : i32
    %c0_i32_1 = arith.constant 0 : i32
    return %c0_i32, %c0_i32_0, %arg1 : i32, i32, i32
  }
  func.func @transform_4(%arg0: i32, %arg1: i32) -> (i32, i32) {
    %c0_i32 = arith.constant 0 : i32
    %c0_i32_0 = arith.constant 0 : i32
    %c0_i32_1 = arith.constant 0 : i32
    return %c0_i32, %c0_i32_0 : i32, i32
  }
  func.func @transform_5(%arg0: i32, %arg1: i32) -> (i32, i32, i32) {
    %c0_i32 = arith.constant 0 : i32
    %c0_i32_0 = arith.constant 0 : i32
    return %arg0, %c0_i32, %arg1 : i32, i32, i32
  }
}

module attributes {stable_mosaic.version = 11 : i64} {
  func.func @_metric_matmul_kernel(%arg0: i32, %arg1: i32, %arg2: memref<1x4x256xf32, #tpu.memory_space<vmem>>, %arg3: memref<1x4x256xf32, #tpu.memory_space<vmem>>, %arg4: memref<1x2x256xf32, #tpu.memory_space<vmem>>, %arg5: memref<1x2x256xf32, #tpu.memory_space<vmem>>, %arg6: memref<1x1xf32, #tpu.memory_space<smem>>, %arg7: memref<1x1x256xf32, #tpu.memory_space<vmem>>, %arg8: memref<4x256xf32, #tpu.memory_space<vmem>>, %arg9: memref<1x256xi32, #tpu.memory_space<vmem>>, %arg10: memref<4x256xf32, #tpu.memory_space<vmem>>) attributes {dimension_semantics = [#tpu.dimension_semantics<parallel>, #tpu.dimension_semantics<arbitrary>], iteration_bounds = array<i64: 2, 1>, scalar_prefetch = 0 : i64, scratch_operands = 3 : i64, tpu.core_type = #tpu.core_type<tc>, window_params = [{transform_indices = @transform_0, window_bounds = array<i64: 1, 4, 256>}, {transform_indices = @transform_1, window_bounds = array<i64: 1, 4, 256>}, {transform_indices = @transform_2, window_bounds = array<i64: 1, 2, 256>}, {pipeline_mode = #tpu.pipeline_mode<synchronous>, transform_indices = @transform_3, window_bounds = array<i64: 1, 2, 256>}, {transform_indices = @transform_4, window_bounds = array<i64: 1, 1>}, {transform_indices = @transform_5, window_bounds = array<i64: 1, 1, 256>}]} {
    %c0_i32 = arith.constant 0 : i32
    %0 = arith.cmpi eq, %arg1, %c0_i32 : i32
    %1 = arith.extui %0 : i1 to i32
    %c0_i32_0 = arith.constant 0 : i32
    %2 = arith.cmpi ne, %1, %c0_i32_0 : i32
    scf.if %2 {
      %c0_18 = arith.constant 0 : index
      %c0_19 = arith.constant 0 : index
      %c0_20 = arith.constant 0 : index
      %50 = vector.load %arg4[%c0_18, %c0_19, %c0_20] : memref<1x2x256xf32, #tpu.memory_space<vmem>>, vector<1x1x256xf32>
      %51 = vector.shape_cast %50 : vector<1x1x256xf32> to vector<1x256xf32>
      %c0_21 = arith.constant 0 : index
      %c1_22 = arith.constant 1 : index
      %c0_23 = arith.constant 0 : index
      %52 = vector.load %arg4[%c0_21, %c1_22, %c0_23] : memref<1x2x256xf32, #tpu.memory_space<vmem>>, vector<1x1x256xf32>
      %53 = vector.shape_cast %52 : vector<1x1x256xf32> to vector<1x256xf32>
      %c0_24 = arith.constant 0 : index
      %c0_25 = arith.constant 0 : index
      %c0_26 = arith.constant 0 : index
      %54 = vector.load %arg5[%c0_24, %c0_25, %c0_26] : memref<1x2x256xf32, #tpu.memory_space<vmem>>, vector<1x1x256xf32>
      %55 = vector.shape_cast %54 : vector<1x1x256xf32> to vector<1x256xf32>
      %c0_27 = arith.constant 0 : index
      %c1_28 = arith.constant 1 : index
      %c0_29 = arith.constant 0 : index
      %56 = vector.load %arg5[%c0_27, %c1_28, %c0_29] : memref<1x2x256xf32, #tpu.memory_space<vmem>>, vector<1x1x256xf32>
      %57 = vector.shape_cast %56 : vector<1x1x256xf32> to vector<1x256xf32>
      %cst_30 = arith.constant 0.13333334 : f32
      %58 = vector.broadcast %cst_30 : f32 to vector<1x256xf32>
      %59 = arith.mulf %51, %58 : vector<1x256xf32>
      %60 = arith.addf %55, %59 : vector<1x256xf32>
      %cst_31 = arith.constant 1.000000e+00 : f32
      %61 = vector.broadcast %cst_31 : f32 to vector<1x256xf32>
      %62 = arith.addf %60, %61 : vector<1x256xf32>
      %cst_32 = arith.constant 1.600000e+01 : f32
      %63 = vector.broadcast %cst_32 : f32 to vector<1x256xf32>
      %64 = arith.mulf %62, %63 : vector<1x256xf32>
      %cst_33 = arith.constant 1.000000e+00 : f32
      %65 = vector.broadcast %cst_33 : f32 to vector<1x256xf32>
      %66 = arith.subf %64, %65 : vector<1x256xf32>
      %cst_34 = arith.constant 5.000000e-01 : f32
      %67 = vector.broadcast %cst_34 : f32 to vector<1x256xf32>
      %68 = arith.mulf %66, %67 : vector<1x256xf32>
      %cst_35 = arith.constant 0.13333334 : f32
      %69 = vector.broadcast %cst_35 : f32 to vector<1x256xf32>
      %70 = arith.mulf %53, %69 : vector<1x256xf32>
      %71 = arith.addf %57, %70 : vector<1x256xf32>
      %cst_36 = arith.constant 1.000000e+00 : f32
      %72 = vector.broadcast %cst_36 : f32 to vector<1x256xf32>
      %73 = arith.addf %71, %72 : vector<1x256xf32>
      %cst_37 = arith.constant 1.600000e+01 : f32
      %74 = vector.broadcast %cst_37 : f32 to vector<1x256xf32>
      %75 = arith.mulf %73, %74 : vector<1x256xf32>
      %cst_38 = arith.constant 1.000000e+00 : f32
      %76 = vector.broadcast %cst_38 : f32 to vector<1x256xf32>
      %77 = arith.subf %75, %76 : vector<1x256xf32>
      %cst_39 = arith.constant 5.000000e-01 : f32
      %78 = vector.broadcast %cst_39 : f32 to vector<1x256xf32>
      %79 = arith.mulf %77, %78 : vector<1x256xf32>
      %80 = math.floor %68 : vector<1x256xf32>
      %81 = math.floor %79 : vector<1x256xf32>
      %82 = arith.subf %68, %80 : vector<1x256xf32>
      %83 = arith.subf %79, %81 : vector<1x256xf32>
      %cst_40 = arith.constant 1.000000e+00 : f32
      %84 = vector.broadcast %cst_40 : f32 to vector<1x256xf32>
      %85 = arith.subf %84, %82 : vector<1x256xf32>
      %cst_41 = arith.constant 1.000000e+00 : f32
      %86 = vector.broadcast %cst_41 : f32 to vector<1x256xf32>
      %87 = arith.subf %86, %83 : vector<1x256xf32>
      %88 = arith.fptosi %80 : vector<1x256xf32> to vector<1x256xi32>
      %89 = arith.fptosi %81 : vector<1x256xf32> to vector<1x256xi32>
      %c1_i32_42 = arith.constant 1 : i32
      %90 = vector.broadcast %c1_i32_42 : i32 to vector<1x256xi32>
      %91 = arith.addi %88, %90 : vector<1x256xi32>
      %c1_i32_43 = arith.constant 1 : i32
      %92 = vector.broadcast %c1_i32_43 : i32 to vector<1x256xi32>
      %93 = arith.addi %89, %92 : vector<1x256xi32>
      %c0_i32_44 = arith.constant 0 : i32
      %94 = vector.broadcast %c0_i32_44 : i32 to vector<1x256xi32>
      %95 = arith.cmpi sge, %88, %94 : vector<1x256xi32>
      %c16_i32_45 = arith.constant 16 : i32
      %96 = vector.broadcast %c16_i32_45 : i32 to vector<1x256xi32>
      %97 = arith.cmpi slt, %88, %96 : vector<1x256xi32>
      %98 = arith.andi %95, %97 : vector<1x256xi1>
      %c0_i32_46 = arith.constant 0 : i32
      %99 = vector.broadcast %c0_i32_46 : i32 to vector<1x256xi32>
      %100 = arith.cmpi sge, %91, %99 : vector<1x256xi32>
      %c16_i32_47 = arith.constant 16 : i32
      %101 = vector.broadcast %c16_i32_47 : i32 to vector<1x256xi32>
      %102 = arith.cmpi slt, %91, %101 : vector<1x256xi32>
      %103 = arith.andi %100, %102 : vector<1x256xi1>
      %c0_i32_48 = arith.constant 0 : i32
      %104 = vector.broadcast %c0_i32_48 : i32 to vector<1x256xi32>
      %105 = arith.cmpi sge, %89, %104 : vector<1x256xi32>
      %c16_i32_49 = arith.constant 16 : i32
      %106 = vector.broadcast %c16_i32_49 : i32 to vector<1x256xi32>
      %107 = arith.cmpi slt, %89, %106 : vector<1x256xi32>
      %108 = arith.andi %105, %107 : vector<1x256xi1>
      %c0_i32_50 = arith.constant 0 : i32
      %109 = vector.broadcast %c0_i32_50 : i32 to vector<1x256xi32>
      %110 = arith.cmpi sge, %93, %109 : vector<1x256xi32>
      %c16_i32_51 = arith.constant 16 : i32
      %111 = vector.broadcast %c16_i32_51 : i32 to vector<1x256xi32>
      %112 = arith.cmpi slt, %93, %111 : vector<1x256xi32>
      %113 = arith.andi %110, %112 : vector<1x256xi1>
      %cst_52 = arith.constant 0.000000e+00 : f32
      %114 = vector.broadcast %cst_52 : f32 to vector<1x256xf32>
      %115 = arith.andi %98, %108 : vector<1x256xi1>
      %116 = arith.mulf %85, %87 : vector<1x256xf32>
      %117 = arith.select %115, %116, %114 : vector<1x256xi1>, vector<1x256xf32>
      %118 = arith.andi %103, %108 : vector<1x256xi1>
      %119 = arith.mulf %82, %87 : vector<1x256xf32>
      %120 = arith.select %118, %119, %114 : vector<1x256xi1>, vector<1x256xf32>
      %121 = arith.andi %98, %113 : vector<1x256xi1>
      %122 = arith.mulf %85, %83 : vector<1x256xf32>
      %123 = arith.select %121, %122, %114 : vector<1x256xi1>, vector<1x256xf32>
      %124 = arith.andi %103, %113 : vector<1x256xi1>
      %125 = arith.mulf %82, %83 : vector<1x256xf32>
      %126 = arith.select %124, %125, %114 : vector<1x256xi1>, vector<1x256xf32>
      %c0_i32_53 = arith.constant 0 : i32
      %c15_i32 = arith.constant 15 : i32
      %127 = vector.broadcast %c0_i32_53 : i32 to vector<1x256xi32>
      %128 = arith.maxsi %127, %88 : vector<1x256xi32>
      %129 = vector.broadcast %c15_i32 : i32 to vector<1x256xi32>
      %130 = arith.minsi %129, %128 : vector<1x256xi32>
      %c0_i32_54 = arith.constant 0 : i32
      %c15_i32_55 = arith.constant 15 : i32
      %131 = vector.broadcast %c0_i32_54 : i32 to vector<1x256xi32>
      %132 = arith.maxsi %131, %89 : vector<1x256xi32>
      %133 = vector.broadcast %c15_i32_55 : i32 to vector<1x256xi32>
      %134 = arith.minsi %133, %132 : vector<1x256xi32>
      %c16_i32_56 = arith.constant 16 : i32
      %135 = vector.broadcast %c16_i32_56 : i32 to vector<1x256xi32>
      %136 = arith.muli %134, %135 : vector<1x256xi32>
      %137 = arith.addi %136, %130 : vector<1x256xi32>
      %c0_57 = arith.constant 0 : index
      %c0_58 = arith.constant 0 : index
      %138 = vector.load %arg9[%c0_57, %c0_58] : memref<1x256xi32, #tpu.memory_space<vmem>>, vector<1x256xi32>
      tpu.vector_store %arg9[%c0_57, %c0_58], %137 {strides = array<i32>} : memref<1x256xi32, #tpu.memory_space<vmem>>, vector<1x256xi32>,
      %c0_59 = arith.constant 0 : index
      %c0_60 = arith.constant 0 : index
      %139 = vector.load %arg10[%c0_59, %c0_60] : memref<4x256xf32, #tpu.memory_space<vmem>>, vector<1x256xf32>
      tpu.vector_store %arg10[%c0_59, %c0_60], %117 {strides = array<i32>} : memref<4x256xf32, #tpu.memory_space<vmem>>, vector<1x256xf32>,
      %c1_61 = arith.constant 1 : index
      %c0_62 = arith.constant 0 : index
      %140 = vector.load %arg10[%c1_61, %c0_62] : memref<4x256xf32, #tpu.memory_space<vmem>>, vector<1x256xf32>
      tpu.vector_store %arg10[%c1_61, %c0_62], %120 {strides = array<i32>} : memref<4x256xf32, #tpu.memory_space<vmem>>, vector<1x256xf32>,
      %c2_63 = arith.constant 2 : index
      %c0_64 = arith.constant 0 : index
      %141 = vector.load %arg10[%c2_63, %c0_64] : memref<4x256xf32, #tpu.memory_space<vmem>>, vector<1x256xf32>
      tpu.vector_store %arg10[%c2_63, %c0_64], %123 {strides = array<i32>} : memref<4x256xf32, #tpu.memory_space<vmem>>, vector<1x256xf32>,
      %c3_65 = arith.constant 3 : index
      %c0_66 = arith.constant 0 : index
      %142 = vector.load %arg10[%c3_65, %c0_66] : memref<4x256xf32, #tpu.memory_space<vmem>>, vector<1x256xf32>
      tpu.vector_store %arg10[%c3_65, %c0_66], %126 {strides = array<i32>} : memref<4x256xf32, #tpu.memory_space<vmem>>, vector<1x256xf32>,
    } else {
    }
    %c0 = arith.constant 0 : index
    %c0_1 = arith.constant 0 : index
    %3 = vector.load %arg9[%c0, %c0_1] : memref<1x256xi32, #tpu.memory_space<vmem>>, vector<1x256xi32>
    %4 = tpu.iota {dimensions = array<i32: 0>} : vector<256x256xi32>
    %c256_i32 = arith.constant 256 : i32
    %5 = arith.muli %arg1, %c256_i32 : i32
    %6 = vector.broadcast %5 : i32 to vector<256x256xi32>
    %7 = arith.addi %4, %6 : vector<256x256xi32>
    %8 = vector.broadcast %3 : vector<1x256xi32> to vector<256x256xi32>
    %9 = arith.subi %7, %8 : vector<256x256xi32>
    %cst = arith.constant 0.000000e+00 : f32
    %10 = vector.broadcast %cst : f32 to vector<256x256xf32>
    %c0_i32_2 = arith.constant 0 : i32
    %11 = vector.broadcast %c0_i32_2 : i32 to vector<256x256xi32>
    %12 = arith.cmpi eq, %9, %11 : vector<256x256xi32>
    %c0_3 = arith.constant 0 : index
    %c0_4 = arith.constant 0 : index
    %13 = vector.load %arg10[%c0_3, %c0_4] : memref<4x256xf32, #tpu.memory_space<vmem>>, vector<1x256xf32>
    %14 = vector.shape_cast %13 : vector<1x256xf32> to vector<1x256xf32>
    %15 = vector.broadcast %14 : vector<1x256xf32> to vector<256x256xf32>
    %16 = arith.select %12, %15, %10 : vector<256x256xi1>, vector<256x256xf32>
    %c1_i32 = arith.constant 1 : i32
    %17 = vector.broadcast %c1_i32 : i32 to vector<256x256xi32>
    %18 = arith.cmpi eq, %9, %17 : vector<256x256xi32>
    %c1 = arith.constant 1 : index
    %c0_5 = arith.constant 0 : index
    %19 = vector.load %arg10[%c1, %c0_5] : memref<4x256xf32, #tpu.memory_space<vmem>>, vector<1x256xf32>
    %20 = vector.shape_cast %19 : vector<1x256xf32> to vector<1x256xf32>
    %21 = vector.broadcast %20 : vector<1x256xf32> to vector<256x256xf32>
    %22 = arith.select %18, %21, %10 : vector<256x256xi1>, vector<256x256xf32>
    %23 = arith.addf %16, %22 : vector<256x256xf32>
    %c16_i32 = arith.constant 16 : i32
    %24 = vector.broadcast %c16_i32 : i32 to vector<256x256xi32>
    %25 = arith.cmpi eq, %9, %24 : vector<256x256xi32>
    %c2 = arith.constant 2 : index
    %c0_6 = arith.constant 0 : index
    %26 = vector.load %arg10[%c2, %c0_6] : memref<4x256xf32, #tpu.memory_space<vmem>>, vector<1x256xf32>
    %27 = vector.shape_cast %26 : vector<1x256xf32> to vector<1x256xf32>
    %28 = vector.broadcast %27 : vector<1x256xf32> to vector<256x256xf32>
    %29 = arith.select %25, %28, %10 : vector<256x256xi1>, vector<256x256xf32>
    %30 = arith.addf %23, %29 : vector<256x256xf32>
    %c17_i32 = arith.constant 17 : i32
    %31 = vector.broadcast %c17_i32 : i32 to vector<256x256xi32>
    %32 = arith.cmpi eq, %9, %31 : vector<256x256xi32>
    %c3 = arith.constant 3 : index
    %c0_7 = arith.constant 0 : index
    %33 = vector.load %arg10[%c3, %c0_7] : memref<4x256xf32, #tpu.memory_space<vmem>>, vector<1x256xf32>
    %34 = vector.shape_cast %33 : vector<1x256xf32> to vector<1x256xf32>
    %35 = vector.broadcast %34 : vector<1x256xf32> to vector<256x256xf32>
    %36 = arith.select %32, %35, %10 : vector<256x256xi1>, vector<256x256xf32>
    %37 = arith.addf %30, %36 : vector<256x256xf32>
    %c0_8 = arith.constant 0 : index
    %c0_9 = arith.constant 0 : index
    %c0_10 = arith.constant 0 : index
    %38 = vector.load %arg3[%c0_8, %c0_9, %c0_10] : memref<1x4x256xf32, #tpu.memory_space<vmem>>, vector<1x4x256xf32>
    %39 = vector.shape_cast %38 : vector<1x4x256xf32> to vector<4x256xf32>
    %cst_11 = arith.constant dense<0.000000e+00> : vector<4x256xf32>
    %40 = tpu.matmul %39, %37, %cst_11 {dimension_numbers = #tpu.dot_dimension_numbers<[1], [0], [0], [1], [0, 0, 1, 1], [], []>} : vector<4x256xf32>, vector<256x256xf32>, vector<4x256xf32> -> vector<4x256xf32>
    %c0_i32_12 = arith.constant 0 : i32
    %41 = arith.cmpi eq, %arg1, %c0_i32_12 : i32
    %42 = arith.extui %41 : i1 to i32
    %c0_i32_13 = arith.constant 0 : i32
    %43 = arith.cmpi ne, %42, %c0_i32_13 : i32
    scf.if %43 {
      %c0_18 = arith.constant 0 : index
      %c0_19 = arith.constant 0 : index
      %50 = vector.load %arg8[%c0_18, %c0_19] : memref<4x256xf32, #tpu.memory_space<vmem>>, vector<4x256xf32>
      tpu.vector_store %arg8[%c0_18, %c0_19], %40 {strides = array<i32>} : memref<4x256xf32, #tpu.memory_space<vmem>>, vector<4x256xf32>,
    } else {
    }
    %c0_i32_14 = arith.constant 0 : i32
    %44 = arith.cmpi sgt, %arg1, %c0_i32_14 : i32
    %45 = arith.extui %44 : i1 to i32
    %c0_i32_15 = arith.constant 0 : i32
    %46 = arith.cmpi ne, %45, %c0_i32_15 : i32
    scf.if %46 {
      %c0_18 = arith.constant 0 : index
      %c0_19 = arith.constant 0 : index
      %50 = vector.load %arg8[%c0_18, %c0_19] : memref<4x256xf32, #tpu.memory_space<vmem>>, vector<4x256xf32>
      %51 = arith.addf %50, %40 : vector<4x256xf32>
      %c0_20 = arith.constant 0 : index
      %c0_21 = arith.constant 0 : index
      %52 = vector.load %arg8[%c0_20, %c0_21] : memref<4x256xf32, #tpu.memory_space<vmem>>, vector<4x256xf32>
      tpu.vector_store %arg8[%c0_20, %c0_21], %51 {strides = array<i32>} : memref<4x256xf32, #tpu.memory_space<vmem>>, vector<4x256xf32>,
    } else {
    }
    %c0_i32_16 = arith.constant 0 : i32
    %47 = arith.cmpi eq, %arg1, %c0_i32_16 : i32
    %48 = arith.extui %47 : i1 to i32
    %c0_i32_17 = arith.constant 0 : i32
    %49 = arith.cmpi ne, %48, %c0_i32_17 : i32
    scf.if %49 {
      %c0_18 = arith.constant 0 : index
      %c0_19 = arith.constant 0 : index
      %c0_20 = arith.constant 0 : index
      %50 = vector.load %arg2[%c0_18, %c0_19, %c0_20] : memref<1x4x256xf32, #tpu.memory_space<vmem>>, vector<1x4x256xf32>
      %51 = vector.shape_cast %50 : vector<1x4x256xf32> to vector<4x256xf32>
      %c0_21 = arith.constant 0 : index
      %c0_22 = arith.constant 0 : index
      %52 = vector.load %arg8[%c0_21, %c0_22] : memref<4x256xf32, #tpu.memory_space<vmem>>, vector<4x256xf32>
      %53 = arith.subf %51, %52 : vector<4x256xf32>
      %54 = math.absf %53 : vector<4x256xf32>
      %cst_23 = arith.constant dense<0.000000e+00> : vector<256xf32>
      %55 = vector.multi_reduction <add>, %54, %cst_23 [0] : vector<4x256xf32> to vector<256xf32>
      %56 = vector.shape_cast %55 : vector<256xf32> to vector<1x256xf32>
      %c0_24 = arith.constant 0 : index
      %c0_25 = arith.constant 0 : index
      %57 = memref.load %arg6[%c0_24, %c0_25] : memref<1x1xf32, #tpu.memory_space<smem>>
      %58 = vector.broadcast %57 : f32 to vector<1x256xf32>
      %59 = arith.mulf %58, %56 : vector<1x256xf32>
      %c0_26 = arith.constant 0 : index
      %c0_27 = arith.constant 0 : index
      %c0_28 = arith.constant 0 : index
      %60 = vector.load %arg7[%c0_26, %c0_27, %c0_28] : memref<1x1x256xf32, #tpu.memory_space<vmem>>, vector<1x1x256xf32>
      %61 = vector.shape_cast %60 : vector<1x1x256xf32> to vector<1x256xf32>
      %62 = vector.shape_cast %59 : vector<1x256xf32> to vector<1x1x256xf32>
      tpu.vector_store %arg7[%c0_26, %c0_27, %c0_28], %62 {strides = array<i32>} : memref<1x1x256xf32, #tpu.memory_space<vmem>>, vector<1x1x256xf32>,
    } else {
    }
    return
  }
  func.func @transform_0(%arg0: i32, %arg1: i32) -> (i32, i32, i32) {
    %c0_i32 = arith.constant 0 : i32
    %c0_i32_0 = arith.constant 0 : i32
    %c0_i32_1 = arith.constant 0 : i32
    return %arg0, %c0_i32, %c0_i32_0 : i32, i32, i32
  }
  func.func @transform_1(%arg0: i32, %arg1: i32) -> (i32, i32, i32) {
    %c0_i32 = arith.constant 0 : i32
    %c0_i32_0 = arith.constant 0 : i32
    return %arg0, %c0_i32, %arg1 : i32, i32, i32
  }
  func.func @transform_2(%arg0: i32, %arg1: i32) -> (i32, i32, i32) {
    %c0_i32 = arith.constant 0 : i32
    %c0_i32_0 = arith.constant 0 : i32
    %c0_i32_1 = arith.constant 0 : i32
    return %arg0, %c0_i32, %c0_i32_0 : i32, i32, i32
  }
  func.func @transform_3(%arg0: i32, %arg1: i32) -> (i32, i32, i32) {
    %c0_i32 = arith.constant 0 : i32
    %c0_i32_0 = arith.constant 0 : i32
    %c0_i32_1 = arith.constant 0 : i32
    %c0_i32_2 = arith.constant 0 : i32
    return %c0_i32, %c0_i32_0, %c0_i32_1 : i32, i32, i32
  }
  func.func @transform_4(%arg0: i32, %arg1: i32) -> (i32, i32) {
    %c0_i32 = arith.constant 0 : i32
    %c0_i32_0 = arith.constant 0 : i32
    %c0_i32_1 = arith.constant 0 : i32
    return %c0_i32, %c0_i32_0 : i32, i32
  }
  func.func @transform_5(%arg0: i32, %arg1: i32) -> (i32, i32, i32) {
    %c0_i32 = arith.constant 0 : i32
    %c0_i32_0 = arith.constant 0 : i32
    %c0_i32_1 = arith.constant 0 : i32
    return %arg0, %c0_i32, %c0_i32_0 : i32, i32, i32
  }
}

</mosaic_0001>

<llo_original>
// kernel: tpu_custom_call.1
$region0: #{tpu_custom_call.1}
  #allocation0 [shape = 'u32[]', space=smem, size = 0x4, offset = 0x4, fixed_abs, tag = 'smem constant byte address 0x4 - core index']
  #allocation1 [shape = 'u32[72,128]{1,0:T(1,128)}', space=vmem, size = 0x9000, scoped, tag = 'internal scratch']
  #allocation2 [shape = 'f32[4,256]{1,0:T(4,128)}', space=vmem, size = 0x1000, scoped, tag = 'scratch operand']
  #allocation3 [shape = 's32[1,256]{1,0:T(1,128)}', space=vmem, size = 0x400, scoped, tag = 'scratch operand']
  #allocation4 [shape = 'f32[4,256]{1,0:T(4,128)}', space=vmem, size = 0x1000, scoped, tag = 'scratch operand']
  #allocation5 [shape = 'f32[1,1]{1,0:T(1,128)S(6)}', space=smem, size = 0x200, scoped, tag = 'scoped memory for tpu_custom_call.1']
  %s0 = inlined_call_operand.hbm [shape: f32[2,4,256], index: 0, kind: input, shape index: {}]
  %s1 = inlined_call_operand.hbm [shape: f32[2,4,256], index: 1, kind: input, shape index: {}]
  %s2 = inlined_call_operand.hbm [shape: f32[2,2,256], index: 2, kind: input, shape index: {}]
  %s3 = inlined_call_operand.vmem [shape: f32[1,2,256], index: 3, kind: input, shape index: {}]
  %s4 = inlined_call_operand.<no memory space> [shape: f32[1,1], index: 4, kind: input, shape index: {}]
  %s5 = inlined_call_operand.hbm [shape: f32[2,1,256], index: 5, kind: output, shape index: {}]
  %s6 = sld [smem:[#allocation0]]
  $region81: #{tpu_custom_call.1} parent=0
    _
  %s8 = ssub.s32 1, %s6
  %s9 = scalar_select 0, %s8, %s6
  %10 = sst [smem:[#allocation5]] %s4
  $region1: #{tpu_custom_call.1} parent=0
    #allocation6 [shape = 'u8[8192]{0}', space=vmem, size = 0x2000, scoped, tag = 'input window, operand 0']
    #allocation7 [shape = 's32[2]{0}', space=sflag, size = 0x8, scoped, tag = 'scoped memory for tpu_custom_call.1']
    #allocation8 [shape = 's32[2]{0}', space=sflag, size = 0x8, scoped, tag = 'scoped memory for tpu_custom_call.1']
    #allocation9 [shape = 'u8[8192]{0}', space=vmem, size = 0x2000, scoped, tag = 'input window, operand 1']
    #allocation10 [shape = 's32[2]{0}', space=sflag, size = 0x8, scoped, tag = 'scoped memory for tpu_custom_call.1']
    #allocation11 [shape = 'u8[4096]{0}', space=vmem, size = 0x1000, scoped, tag = 'input window, operand 2']
    #allocation12 [shape = 'u8[2048]{0}', space=vmem, size = 0x800, scoped, tag = 'output window, operand 0']
    %11 = vsyncpa [#allocation7], 0
    %s12 = scalar_lea.sflag [#allocation7], 1
    %13 = vsyncpa %s12, 0
    %14 = vsyncpa [#allocation10], 0
    %s15 = scalar_lea.sflag [#allocation10], 1
    %16 = vsyncpa %s15, 0
    %17 = vsyncpa [#allocation8], 0
    %s18 = scalar_lea.sflag [#allocation8], 1
    %19 = vsyncpa %s18, 0
    loop: start=0, step=1, limit=4
    $region2: #{tpu_custom_call.1} parent=1 // loop_pre_header
      _
    $region3: #{tpu_custom_call.1} parent=1 // loop_header
      %s21 = sphi 0, %s25
      %p22 = scmp.ge.s32.totalorder %s21, 4
      %s28 = sphi 0, %s40
      %s29 = sphi 0, %s36
      %s30 = sphi 0, %s28
      %s31 = sphi 0, %s29
      %s32 = sphi 0, %s30
      %s33 = sphi 0, %s31
      %s43 = sphi 0, %s45
      %s46 = sphi 0, %s43
      %s47 = sphi 0, %s46
      %s63 = sphi 0, %s47
      %s71 = sphi 0, %s73
      %s74 = sphi 0, %s71
      %s75 = sphi 0, %s74
      %s91 = sphi 0, %s75
      %s97 = sphi 0, %s99
      %s100 = sphi 0, %s97
      %s101 = sphi 0, %s100
      %s117 = sphi 0, %s101
      %s121 = sphi 0, %s121
      %s123 = sphi 0, %s121
      %s124 = sphi 0, %s123
      %s138 = sphi 0, %s124
      %s142 = sphi 0, %s142
      %s144 = sphi 0, %s142
      %s145 = sphi 0, %s144
      %s159 = sphi 0, %s145
      %s165 = sphi 0, %s167
      %s168 = sphi 0, %s165
      %s169 = sphi 0, %s168
      %s185 = sphi 0, %s169
    $region4: #{tpu_custom_call.1} parent=1 // loop_header_branch
      %24 = sbr.rel (%p22) target = $region8
    $region5: #{tpu_custom_call.1} parent=1 // loop_body
      %s26 = ssub.s32 %s21, 1
      %s27 = ssub.s32 %s21, 2
      %s34 = sadd.s32 1, %s29
      %p35 = scmp.ge.s32.totalorder %s34, 1
      %s36 = scalar_select %p35, 0, %s34
      %s37 = sadd.s32 1, %s28
      %s38 = scalar_select %p35, %s37, %s28
      %p39 = scmp.ge.s32.totalorder %s38, 2
      %s40 = scalar_select %p39, 0, %s38
      %s41 = ssub.s32 %s28, %s40
      %p42 = scmp.eq.s32.totalorder %s41, 0
      %s44 = sadd.s32 %s43, 1
      %s45 = scalar_select %p42, %s43, %s44
      %p48 = pneg %p42
      %p49 = scmp.eq.s32.totalorder %s21, 1
      %p50 = por %p48, %p49
      %p51 = scmp.ne.s32.totalorder %s43, %s46
      %p52 = scmp.eq.s32.totalorder %s21, 0
      %p53 = por %p51, %p52
      %p54 = scmp.ne.s32.totalorder %s43, %s46
      %p55 = scmp.eq.s32.totalorder %s26, 1
      %p56 = por %p54, %p55
      %p57 = scmp.ne.s32.totalorder %s46, %s47
      %p58 = scmp.eq.s32.totalorder %s26, 0
      %p59 = por %p57, %p58
      %p60 = scmp.ne.s32.totalorder %s46, %s47
      %p61 = scmp.eq.s32.totalorder %s27, 1
      %p62 = por %p60, %p61
      %p64 = scmp.ne.s32.totalorder %s47, %s63
      %p65 = scmp.eq.s32.totalorder %s27, 0
      %p66 = por %p64, %p65
      %s67 = ssub.s32 %s28, %s40
      %s68 = ssub.s32 %s29, %s36
      %s69 = sor.u32 %s67, %s68
      %p70 = scmp.eq.s32.totalorder %s69, 0
      %s72 = sadd.s32 %s71, 1
      %s73 = scalar_select %p70, %s71, %s72
      %p76 = pneg %p70
      %p77 = scmp.eq.s32.totalorder %s21, 1
      %p78 = por %p76, %p77
      %p79 = scmp.ne.s32.totalorder %s71, %s74
      %p80 = scmp.eq.s32.totalorder %s21, 0
      %p81 = por %p79, %p80
      %p82 = scmp.ne.s32.totalorder %s71, %s74
      %p83 = scmp.eq.s32.totalorder %s26, 1
      %p84 = por %p82, %p83
      %p85 = scmp.ne.s32.totalorder %s74, %s75
      %p86 = scmp.eq.s32.totalorder %s26, 0
      %p87 = por %p85, %p86
      %p88 = scmp.ne.s32.totalorder %s74, %s75
      %p89 = scmp.eq.s32.totalorder %s27, 1
      %p90 = por %p88, %p89
      %p92 = scmp.ne.s32.totalorder %s75, %s91
      %p93 = scmp.eq.s32.totalorder %s27, 0
      %p94 = por %p92, %p93
      %s95 = ssub.s32 %s28, %s40
      %p96 = scmp.eq.s32.totalorder %s95, 0
      %s98 = sadd.s32 %s97, 1
      %s99 = scalar_select %p96, %s97, %s98
      %p102 = pneg %p96
      %p103 = scmp.eq.s32.totalorder %s21, 1
      %p104 = por %p102, %p103
      %p105 = scmp.ne.s32.totalorder %s97, %s100
      %p106 = scmp.eq.s32.totalorder %s21, 0
      %p107 = por %p105, %p106
      %p108 = scmp.ne.s32.totalorder %s97, %s100
      %p109 = scmp.eq.s32.totalorder %s26, 1
      %p110 = por %p108, %p109
      %p111 = scmp.ne.s32.totalorder %s100, %s101
      %p112 = scmp.eq.s32.totalorder %s26, 0
      %p113 = por %p111, %p112
      %p114 = scmp.ne.s32.totalorder %s100, %s101
      %p115 = scmp.eq.s32.totalorder %s27, 1
      %p116 = por %p114, %p115
      %p118 = scmp.ne.s32.totalorder %s101, %s117
      %p119 = scmp.eq.s32.totalorder %s27, 0
      %p120 = por %p118, %p119
      %s122 = sadd.s32 %s121, 1
      %p125 = scmp.eq.s32.totalorder %s21, 1
      %p126 = scmp.ne.s32.totalorder %s121, %s123
      %p127 = scmp.eq.s32.totalorder %s21, 0
      %p128 = por %p126, %p127
      %p129 = scmp.ne.s32.totalorder %s121, %s123
      %p130 = scmp.eq.s32.totalorder %s26, 1
      %p131 = por %p129, %p130
      %p132 = scmp.ne.s32.totalorder %s123, %s124
      %p133 = scmp.eq.s32.totalorder %s26, 0
      %p134 = por %p132, %p133
      %p135 = scmp.ne.s32.totalorder %s123, %s124
      %p136 = scmp.eq.s32.totalorder %s27, 1
      %p137 = por %p135, %p136
      %p139 = scmp.ne.s32.totalorder %s124, %s138
      %p140 = scmp.eq.s32.totalorder %s27, 0
      %p141 = por %p139, %p140
      %s143 = sadd.s32 %s142, 1
      %p146 = scmp.eq.s32.totalorder %s21, 1
      %p147 = scmp.ne.s32.totalorder %s142, %s144
      %p148 = scmp.eq.s32.totalorder %s21, 0
      %p149 = por %p147, %p148
      %p150 = scmp.ne.s32.totalorder %s142, %s144
      %p151 = scmp.eq.s32.totalorder %s26, 1
      %p152 = por %p150, %p151
      %p153 = scmp.ne.s32.totalorder %s144, %s145
      %p154 = scmp.eq.s32.totalorder %s26, 0
      %p155 = por %p153, %p154
      %p156 = scmp.ne.s32.totalorder %s144, %s145
      %p157 = scmp.eq.s32.totalorder %s27, 1
      %p158 = por %p156, %p157
      %p160 = scmp.ne.s32.totalorder %s145, %s159
      %p161 = scmp.eq.s32.totalorder %s27, 0
      %p162 = por %p160, %p161
      %s163 = ssub.s32 %s28, %s40
      %p164 = scmp.eq.s32.totalorder %s163, 0
      %s166 = sadd.s32 %s165, 1
      %s167 = scalar_select %p164, %s165, %s166
      %p170 = pneg %p164
      %p171 = scmp.eq.s32.totalorder %s21, 1
      %p172 = por %p170, %p171
      %p173 = scmp.ne.s32.totalorder %s165, %s168
      %p174 = scmp.eq.s32.totalorder %s21, 0
      %p175 = por %p173, %p174
      %p176 = scmp.ne.s32.totalorder %s165, %s168
      %p177 = scmp.eq.s32.totalorder %s26, 1
      %p178 = por %p176, %p177
      %p179 = scmp.ne.s32.totalorder %s168, %s169
      %p180 = scmp.eq.s32.totalorder %s26, 0
      %p181 = por %p179, %p180
      %p182 = scmp.ne.s32.totalorder %s168, %s169
      %p183 = scmp.eq.s32.totalorder %s27, 1
      %p184 = por %p182, %p183
      %p186 = scmp.ne.s32.totalorder %s169, %s185
      %p187 = scmp.eq.s32.totalorder %s27, 0
      %p188 = por %p186, %p187
      %p189 = scmp.le.s32.totalorder 1, %s21
      %p190 = scmp.lt.s32.totalorder %s21, 3
      %p191 = pnand %p189, %p190
      %p192 = pneg %p191
      // Predicated region
      $region9: #{tpu_custom_call.1} parent=5 // pred_check
        _
      $region10: #{tpu_custom_call.1} parent=5 // pred_check_branch
        %194 = sbr.rel (%p191) target = $region12
      $region11: #{tpu_custom_call.1} parent=5 // pred_region
        %s195 = ssub.s32 %s21, 1
        // Predicated region
        $region13: #{tpu_custom_call.1} parent=11 // pred_check
          %p196 = pneg %p134
        $region14: #{tpu_custom_call.1} parent=11 // pred_check_branch
          %198 = sbr.rel (%p196) target = $region16
        $region15: #{tpu_custom_call.1} parent=11 // pred_region
          _
        $region16: #{tpu_custom_call.1} parent=11 // pred_fallthru
          _
        // Predicated region
        $region17: #{tpu_custom_call.1} parent=11 // pred_check
          %p199 = pneg %p155
        $region18: #{tpu_custom_call.1} parent=11 // pred_check_branch
          %201 = sbr.rel (%p199) target = $region20
        $region19: #{tpu_custom_call.1} parent=11 // pred_region
          _
        $region20: #{tpu_custom_call.1} parent=11 // pred_fallthru
          _
      $region12: #{tpu_custom_call.1} parent=5 // pred_fallthru
        _
      %p202 = scmp.lt.s32.totalorder %s21, 2
      // Predicated region
      $region21: #{tpu_custom_call.1} parent=5 // pred_check
        %p203 = pneg %p202
      $region22: #{tpu_custom_call.1} parent=5 // pred_check_branch
        %205 = sbr.rel (%p203) target = $region24
      $region23: #{tpu_custom_call.1} parent=5 // pred_region
        // Predicated region
        $region25: #{tpu_custom_call.1} parent=23 // pred_check
          %p206 = pneg %p53
        $region26: #{tpu_custom_call.1} parent=23 // pred_check_branch
          %208 = sbr.rel (%p206) target = $region28
        $region27: #{tpu_custom_call.1} parent=23 // pred_region
          %s209 = sand.u32 %s43, 1
          %s210 = scalar_lea.sflag [#allocation7], %s209
          %s211 = sand.u32 %s43, 1
          %s212 = smul.addr %s211, 8
          %s213 = scalar_lea.vmem [#allocation6], %s212
          %215 = vsyncadd %s210, 0
          %s216 = smul.addr %s28, 2
          %s217 = smul.addr %s216, 4
          %s218 = scalar_lea.hbm %s0, %s217
          %s220 = sshll.u32 %s218, 4
          %s221 = int_to_ptr.hbm [resolvable:$true] %s220
          %s222 = sshll.u32 %s213, 4
          %s223 = int_to_ptr.vmem [resolvable:$true] %s222
          %225 = dma.hbm_to_vmem [thread:$0]  %s221, 128, %s223, %s210
        $region28: #{tpu_custom_call.1} parent=23 // pred_fallthru
          _
        // Predicated region
        $region29: #{tpu_custom_call.1} parent=23 // pred_check
          %p226 = pneg %p81
        $region30: #{tpu_custom_call.1} parent=23 // pred_check_branch
          %228 = sbr.rel (%p226) target = $region32
        $region31: #{tpu_custom_call.1} parent=23 // pred_region
          %s229 = sand.u32 %s21, 1
          %s230 = scalar_lea.sflag [#allocation10], %s229
          %s231 = sand.u32 %s71, 1
          %s232 = smul.addr %s231, 8
          %s233 = scalar_lea.vmem [#allocation9], %s232
          %s234 = smul.u32 2, %s29
          %236 = vsyncadd %s230, 0
          %s237 = smul.addr %s28, 2
          %s238 = sadd.s32 %s234, %s237
          %s239 = smul.addr %s238, 4
          %s240 = scalar_lea.hbm %s1, %s239
          %s242 = sshll.u32 %s240, 4
          %s243 = int_to_ptr.hbm [resolvable:$true] %s242
          %s244 = sshll.u32 %s233, 4
          %s245 = int_to_ptr.vmem [resolvable:$true] %s244
          %247 = dma.hbm_to_vmem [thread:$0]  %s243, 128, %s245, %s230
        $region32: #{tpu_custom_call.1} parent=23 // pred_fallthru
          _
        // Predicated region
        $region33: #{tpu_custom_call.1} parent=23 // pred_check
          %p248 = pneg %p107
        $region34: #{tpu_custom_call.1} parent=23 // pred_check_branch
          %250 = sbr.rel (%p248) target = $region36
        $region35: #{tpu_custom_call.1} parent=23 // pred_region
          %s251 = sand.u32 %s21, 1
          %s252 = scalar_lea.sflag [#allocation10], %s251
          %s253 = sand.u32 %s97, 1
          %s254 = smul.addr %s253, 4
          %s255 = scalar_lea.vmem [#allocation11], %s254
          %257 = vsyncadd %s252, 0
          %s258 = smul.addr %s28, 2
          %s259 = smul.addr %s258, 2
          %s260 = scalar_lea.hbm %s2, %s259
          %s262 = sshll.u32 %s260, 4
          %s263 = int_to_ptr.hbm [resolvable:$true] %s262
          %s264 = sshll.u32 %s255, 4
          %s265 = int_to_ptr.vmem [resolvable:$true] %s264
          %267 = dma.hbm_to_vmem [thread:$0]  %s263, 64, %s265, %s252
        $region36: #{tpu_custom_call.1} parent=23 // pred_fallthru
          _
      $region24: #{tpu_custom_call.1} parent=5 // pred_fallthru
        _
      %p268 = scmp.le.s32.totalorder 1, %s21
      %p269 = scmp.lt.s32.totalorder %s21, 3
      %p270 = pnand %p268, %p269
      %p271 = pneg %p270
      // Predicated region
      $region37: #{tpu_custom_call.1} parent=5 // pred_check
        _
      $region38: #{tpu_custom_call.1} parent=5 // pred_check_branch
        %273 = sbr.rel (%p270) target = $region40
      $region39: #{tpu_custom_call.1} parent=5 // pred_region
        %s274 = ssub.s32 %s21, 1
        %s275 = sand.u32 %s46, 1
        %s276 = scalar_lea.sflag [#allocation7], %s275
        %s277 = sand.u32 %s46, 1
        %s278 = smul.addr %s277, 8
        %s279 = scalar_lea.vmem [#allocation6], %s278
        // Predicated region
        $region41: #{tpu_custom_call.1} parent=39 // pred_check
          %p280 = pneg %p59
        $region42: #{tpu_custom_call.1} parent=39 // pred_check_branch
          %282 = sbr.rel (%p280) target = $region44
        $region43: #{tpu_custom_call.1} parent=39 // pred_region
          %284 = dma.done %s276, 128
        $region44: #{tpu_custom_call.1} parent=39 // pred_fallthru
          _
        %s285 = sand.u32 %s26, 1
        %s286 = scalar_lea.sflag [#allocation10], %s285
        %s287 = sand.u32 %s74, 1
        %s288 = smul.addr %s287, 8
        %s289 = scalar_lea.vmem [#allocation9], %s288
        // Predicated region
        $region45: #{tpu_custom_call.1} parent=39 // pred_check
          %p290 = pneg %p87
        $region46: #{tpu_custom_call.1} parent=39 // pred_check_branch
          %292 = sbr.rel (%p290) target = $region48
        $region47: #{tpu_custom_call.1} parent=39 // pred_region
          %294 = dma.done %s286, 128
        $region48: #{tpu_custom_call.1} parent=39 // pred_fallthru
          _
        %s295 = sand.u32 %s26, 1
        %s296 = scalar_lea.sflag [#allocation10], %s295
        %s297 = sand.u32 %s100, 1
        %s298 = smul.addr %s297, 4
        %s299 = scalar_lea.vmem [#allocation11], %s298
        // Predicated region
        $region49: #{tpu_custom_call.1} parent=39 // pred_check
          %p300 = pneg %p113
        $region50: #{tpu_custom_call.1} parent=39 // pred_check_branch
          %302 = sbr.rel (%p300) target = $region52
        $region51: #{tpu_custom_call.1} parent=39 // pred_region
          %304 = dma.done %s296, 64
        $region52: #{tpu_custom_call.1} parent=39 // pred_fallthru
          _
        %s305 = sand.u32 %s46, 1
        %s306 = scalar_lea.sflag [#allocation7], %s305
        %s307 = sand.u32 %s46, 1
        %s308 = smul.addr %s307, 8
        %s309 = scalar_lea.vmem [#allocation6], %s308
        %p310 = pneg %p59
        %p311 = pneg %p56
        %s312 = sand.u32 %s26, 1
        %s313 = scalar_lea.sflag [#allocation10], %s312
        %s314 = sand.u32 %s74, 1
        %s315 = smul.addr %s314, 8
        %s316 = scalar_lea.vmem [#allocation9], %s315
        %p317 = pneg %p87
        %p318 = pneg %p84
        %s319 = sand.u32 %s26, 1
        %s320 = scalar_lea.sflag [#allocation10], %s319
        %s321 = sand.u32 %s100, 1
        %s322 = smul.addr %s321, 4
        %s323 = scalar_lea.vmem [#allocation11], %s322
        %p324 = pneg %p113
        %p325 = pneg %p110
        %p326 = pneg %p134
        %p327 = pneg %p131
        %p328 = pneg %p155
        %p329 = pneg %p152
        %p330 = pneg %p181
        %p331 = pneg %p178
        %s332 = sand.u32 %s168, 1
        %s333 = scalar_lea.sflag [#allocation8], %s332
        %s334 = sand.u32 %s168, 1
        %s335 = smul.addr %s334, 2
        %s336 = scalar_lea.vmem [#allocation12], %s335
        %s337 = smul.u32 2, %s31
        %p338 = scmp.eq.s32.totalorder %s31, 0
        // Predicated region
        $region53: #{tpu_custom_call.1} parent=39 // pred_check
          %p339 = pneg %p338
        $region54: #{tpu_custom_call.1} parent=39 // pred_check_branch
          %341 = sbr.rel (%p339) target = $region56
        $region55: #{tpu_custom_call.1} parent=39 // pred_region
          %v342 = vld [vmem:[%s299] ss:$2 sm:$0x3]
          %s343 = scalar_lea.vmem %s299, 1 [#allocation11]
          %v344 = vld [vmem:[%s343] ss:$2 sm:$0x3]
          %v345 = vld [vmem:[%s3] ss:$2 sm:$0x3]
          %s346 = scalar_lea.vmem %s3, 1
          %v347 = vld [vmem:[%s346] ss:$2 sm:$0x3]
          %v348 = vmul.f32 %v342, 0.13333334
          %v349 = vadd.f32 %v345, %v348
          %v350 = vadd.f32 %v349, 1.0
          %v351 = vmul.f32 %v350, 16.0
          %v352 = vsub.f32 %v351, 1.0
          %v353 = vmul.f32 %v352, 0.5
          %v354 = vmul.f32 %v344, 0.13333334
          %v355 = vadd.f32 %v347, %v354
          %v356 = vadd.f32 %v355, 1.0
          %v357 = vmul.f32 %v356, 16.0
          %v358 = vsub.f32 %v357, 1.0
          %v359 = vmul.f32 %v358, 0.5
          %v360 = vfloor.f32 %v353
          %v361 = vfloor.f32 %v359
          %v362 = vsub.f32 %v353, %v360
          %v363 = vsub.f32 %v359, %v361
          %v364 = vsub.f32 1.0, %v362
          %v365 = vsub.f32 1.0, %v363
          %v366 = vcvt.f32.s32.to.zero.pseudo %v360
          %v367 = vcvt.f32.s32.to.zero.pseudo %v361
          %v368 = vadd.s32 %v366, 1
          %v369 = vadd.s32 %v367, 1
          %vm370 = vcmp.ge.s32.totalorder %v366, 0
          %vm371 = vcmp.lt.s32.totalorder %v366, 16
          %vm372 = vmand %vm370, %vm371
          %vm373 = vcmp.ge.s32.totalorder %v368, 0
          %vm374 = vcmp.lt.s32.totalorder %v368, 16
          %vm375 = vmand %vm373, %vm374
          %vm376 = vcmp.ge.s32.totalorder %v367, 0
          %vm377 = vcmp.lt.s32.totalorder %v367, 16
          %vm378 = vmand %vm376, %vm377
          %vm379 = vcmp.ge.s32.totalorder %v369, 0
          %vm380 = vcmp.lt.s32.totalorder %v369, 16
          %vm381 = vmand %vm379, %vm380
          %vm382 = vmand %vm372, %vm378
          %v383 = vmul.f32 %v364, %v365
          %v384 = vsel %vm382, %v383, 0.0
          %vm385 = vmand %vm375, %vm378
          %v386 = vmul.f32 %v362, %v365
          %v387 = vsel %vm385, %v386, 0.0
          %vm388 = vmand %vm372, %vm381
          %v389 = vmul.f32 %v364, %v363
          %v390 = vsel %vm388, %v389, 0.0
          %vm391 = vmand %vm375, %vm381
          %v392 = vmul.f32 %v362, %v363
          %v393 = vsel %vm391, %v392, 0.0
          %vm394 = vcmp.gt.s32.totalorder %v366, 0
          %v395 = vsel %vm394, %v366, 0
          %vm396 = vcmp.lt.s32.totalorder %v395, 15
          %v397 = vsel %vm396, %v395, 15
          %vm398 = vcmp.gt.s32.totalorder %v367, 0
          %v399 = vsel %vm398, %v367, 0
          %vm400 = vcmp.lt.s32.totalorder %v399, 15
          %v401 = vsel %vm400, %v399, 15
          %v402 = vmul.u32 %v401, 16
          %v403 = vadd.s32 %v402, %v397
          %v404 = vlaneseq
          %vm405 = vcmp.ge.s32.totalorder %v404, 0
          %vm406 = vcmp.lt.s32.totalorder %v404, 256
          %vm407 = vmand %vm405, %vm406
          %408 = vst.msk [vmem:[#allocation3] sm:$0x3] %vm407, %v403
          %409 = vst.msk [vmem:[#allocation4] ss:$4 sm:$0x3] %vm407, %v384
          %s410 = scalar_lea.vmem [#allocation4], 1
          %411 = vst.msk [vmem:[%s410] ss:$4 sm:$0x3] %vm407, %v387
          %s412 = scalar_lea.vmem [#allocation4], 2
          %413 = vst.msk [vmem:[%s412] ss:$4 sm:$0x3] %vm407, %v390
          %s414 = scalar_lea.vmem [#allocation4], 3
          %415 = vst.msk [vmem:[%s414] ss:$4 sm:$0x3] %vm407, %v393
        $region56: #{tpu_custom_call.1} parent=39 // pred_fallthru
          _
        %v416 = vld [vmem:[#allocation3] sm:$0x3]
        %v417 = vlaneseq
        %v418 = vshrl.u32 %v417, 7
        %v419 = vadd.s32 %v418, 8
        %v420 = vadd.s32 %v418, 16
        %v421 = vadd.s32 %v418, 24
        %v422 = vadd.s32 %v418, 32
        %v423 = vadd.s32 %v418, 40
        %v424 = vadd.s32 %v418, 48
        %v425 = vadd.s32 %v418, 56
        %v426 = vadd.s32 %v418, 64
        %v427 = vadd.s32 %v418, 72
        %v428 = vadd.s32 %v418, 80
        %v429 = vadd.s32 %v418, 88
        %v430 = vadd.s32 %v418, 96
        %v431 = vadd.s32 %v418, 104
        %v432 = vadd.s32 %v418, 112
        %v433 = vadd.s32 %v418, 120
        %v434 = vadd.s32 %v418, 128
        %v435 = vadd.s32 %v418, 136
        %v436 = vadd.s32 %v418, 144
        %v437 = vadd.s32 %v418, 152
        %v438 = vadd.s32 %v418, 160
        %v439 = vadd.s32 %v418, 168
        %v440 = vadd.s32 %v418, 176
        %v441 = vadd.s32 %v418, 184
        %v442 = vadd.s32 %v418, 192
        %v443 = vadd.s32 %v418, 200
        %v444 = vadd.s32 %v418, 208
        %v445 = vadd.s32 %v418, 216
        %v446 = vadd.s32 %v418, 224
        %v447 = vadd.s32 %v418, 232
        %v448 = vadd.s32 %v418, 240
        %v449 = vadd.s32 %v418, 248
        %s450 = smul.u32 %s31, 256
        %v451 = vstv %s450
        %v452 = vadd.s32 %v418, %v451
        %v453 = vadd.s32 %v419, %v451
        %v454 = vadd.s32 %v420, %v451
        %v455 = vadd.s32 %v421, %v451
        %v456 = vadd.s32 %v422, %v451
        %v457 = vadd.s32 %v423, %v451
        %v458 = vadd.s32 %v424, %v451
        %v459 = vadd.s32 %v425, %v451
        %v460 = vadd.s32 %v426, %v451
        %v461 = vadd.s32 %v427, %v451
        %v462 = vadd.s32 %v428, %v451
        %v463 = vadd.s32 %v429, %v451
        %v464 = vadd.s32 %v430, %v451
        %v465 = vadd.s32 %v431, %v451
        %v466 = vadd.s32 %v432, %v451
        %v467 = vadd.s32 %v433, %v451
        %v468 = vadd.s32 %v434, %v451
        %v469 = vadd.s32 %v435, %v451
        %v470 = vadd.s32 %v436, %v451
        %v471 = vadd.s32 %v437, %v451
        %v472 = vadd.s32 %v438, %v451
        %v473 = vadd.s32 %v439, %v451
        %v474 = vadd.s32 %v440, %v451
        %v475 = vadd.s32 %v441, %v451
        %v476 = vadd.s32 %v442, %v451
        %v477 = vadd.s32 %v443, %v451
        %v478 = vadd.s32 %v444, %v451
        %v479 = vadd.s32 %v445, %v451
        %v480 = vadd.s32 %v446, %v451
        %v481 = vadd.s32 %v447, %v451
        %v482 = vadd.s32 %v448, %v451
        %v483 = vadd.s32 %v449, %v451
        %v484 = vperm.slane %v416, 0
        %v485 = vperm.slane %v416, 1
        %v486 = vsub.s32 %v452, %v484
        %v487 = vsub.s32 %v452, %v485
        %v488 = vsub.s32 %v453, %v484
        %v489 = vsub.s32 %v453, %v485
        %v490 = vsub.s32 %v454, %v484
        %v491 = vsub.s32 %v454, %v485
        %v492 = vsub.s32 %v455, %v484
        %v493 = vsub.s32 %v455, %v485
        %v494 = vsub.s32 %v456, %v484
        %v495 = vsub.s32 %v456, %v485
        %v496 = vsub.s32 %v457, %v484
        %v497 = vsub.s32 %v457, %v485
        %v498 = vsub.s32 %v458, %v484
        %v499 = vsub.s32 %v458, %v485
        %v500 = vsub.s32 %v459, %v484
        %v501 = vsub.s32 %v459, %v485
        %v502 = vsub.s32 %v460, %v484
        %v503 = vsub.s32 %v460, %v485
        %v504 = vsub.s32 %v461, %v484
        %v505 = vsub.s32 %v461, %v485
        %v506 = vsub.s32 %v462, %v484
        %v507 = vsub.s32 %v462, %v485
        %v508 = vsub.s32 %v463, %v484
        %v509 = vsub.s32 %v463, %v485
        %v510 = vsub.s32 %v464, %v484
        %v511 = vsub.s32 %v464, %v485
        %v512 = vsub.s32 %v465, %v484
        %v513 = vsub.s32 %v465, %v485
        %v514 = vsub.s32 %v466, %v484
        %v515 = vsub.s32 %v466, %v485
        %v516 = vsub.s32 %v467, %v484
        %v517 = vsub.s32 %v467, %v485
        %v518 = vsub.s32 %v468, %v484
        %v519 = vsub.s32 %v468, %v485
        %v520 = vsub.s32 %v469, %v484
        %v521 = vsub.s32 %v469, %v485
        %v522 = vsub.s32 %v470, %v484
        %v523 = vsub.s32 %v470, %v485
        %v524 = vsub.s32 %v471, %v484
        %v525 = vsub.s32 %v471, %v485
        %v526 = vsub.s32 %v472, %v484
        %v527 = vsub.s32 %v472, %v485
        %v528 = vsub.s32 %v473, %v484
        %v529 = vsub.s32 %v473, %v485
        %v530 = vsub.s32 %v474, %v484
        %v531 = vsub.s32 %v474, %v485
        %v532 = vsub.s32 %v475, %v484
        %v533 = vsub.s32 %v475, %v485
        %v534 = vsub.s32 %v476, %v484
        %v535 = vsub.s32 %v476, %v485
        %v536 = vsub.s32 %v477, %v484
        %v537 = vsub.s32 %v477, %v485
        %v538 = vsub.s32 %v478, %v484
        %v539 = vsub.s32 %v478, %v485
        %v540 = vsub.s32 %v479, %v484
        %v541 = vsub.s32 %v479, %v485
        %v542 = vsub.s32 %v480, %v484
        %v543 = vsub.s32 %v480, %v485
        %v544 = vsub.s32 %v481, %v484
        %v545 = vsub.s32 %v481, %v485
        %v546 = vsub.s32 %v482, %v484
        %v547 = vsub.s32 %v482, %v485
        %v548 = vsub.s32 %v483, %v484
        %v549 = vsub.s32 %v483, %v485
        %vm550 = vcmp.eq.s32.totalorder %v486, 0
        %vm551 = vcmp.eq.s32.totalorder %v487, 0
        %vm552 = vcmp.eq.s32.totalorder %v488, 0
        %vm553 = vcmp.eq.s32.totalorder %v489, 0
        %vm554 = vcmp.eq.s32.totalorder %v490, 0
        %vm555 = vcmp.eq.s32.totalorder %v491, 0
        %vm556 = vcmp.eq.s32.totalorder %v492, 0
        %vm557 = vcmp.eq.s32.totalorder %v493, 0
        %vm558 = vcmp.eq.s32.totalorder %v494, 0
        %vm559 = vcmp.eq.s32.totalorder %v495, 0
        %vm560 = vcmp.eq.s32.totalorder %v496, 0
        %vm561 = vcmp.eq.s32.totalorder %v497, 0
        %vm562 = vcmp.eq.s32.totalorder %v498, 0
        %vm563 = vcmp.eq.s32.totalorder %v499, 0
        %vm564 = vcmp.eq.s32.totalorder %v500, 0
        %vm565 = vcmp.eq.s32.totalorder %v501, 0
        %vm566 = vcmp.eq.s32.totalorder %v502, 0
        %vm567 = vcmp.eq.s32.totalorder %v503, 0
        %vm568 = vcmp.eq.s32.totalorder %v504, 0
        %vm569 = vcmp.eq.s32.totalorder %v505, 0
        %vm570 = vcmp.eq.s32.totalorder %v506, 0
        %vm571 = vcmp.eq.s32.totalorder %v507, 0
        %vm572 = vcmp.eq.s32.totalorder %v508, 0
        %vm573 = vcmp.eq.s32.totalorder %v509, 0
        %vm574 = vcmp.eq.s32.totalorder %v510, 0
        %vm575 = vcmp.eq.s32.totalorder %v511, 0
        %vm576 = vcmp.eq.s32.totalorder %v512, 0
        %vm577 = vcmp.eq.s32.totalorder %v513, 0
        %vm578 = vcmp.eq.s32.totalorder %v514, 0
        %vm579 = vcmp.eq.s32.totalorder %v515, 0
        %vm580 = vcmp.eq.s32.totalorder %v516, 0
        %vm581 = vcmp.eq.s32.totalorder %v517, 0
        %vm582 = vcmp.eq.s32.totalorder %v518, 0
        %vm583 = vcmp.eq.s32.totalorder %v519, 0
        %vm584 = vcmp.eq.s32.totalorder %v520, 0
        %vm585 = vcmp.eq.s32.totalorder %v521, 0
        %vm586 = vcmp.eq.s32.totalorder %v522, 0
        %vm587 = vcmp.eq.s32.totalorder %v523, 0
        %vm588 = vcmp.eq.s32.totalorder %v524, 0
        %vm589 = vcmp.eq.s32.totalorder %v525, 0
        %vm590 = vcmp.eq.s32.totalorder %v526, 0
        %vm591 = vcmp.eq.s32.totalorder %v527, 0
        %vm592 = vcmp.eq.s32.totalorder %v528, 0
        %vm593 = vcmp.eq.s32.totalorder %v529, 0
        %vm594 = vcmp.eq.s32.totalorder %v530, 0
        %vm595 = vcmp.eq.s32.totalorder %v531, 0
        %vm596 = vcmp.eq.s32.totalorder %v532, 0
        %vm597 = vcmp.eq.s32.totalorder %v533, 0
        %vm598 = vcmp.eq.s32.totalorder %v534, 0
        %vm599 = vcmp.eq.s32.totalorder %v535, 0
        %vm600 = vcmp.eq.s32.totalorder %v536, 0
        %vm601 = vcmp.eq.s32.totalorder %v537, 0
        %vm602 = vcmp.eq.s32.totalorder %v538, 0
        %vm603 = vcmp.eq.s32.totalorder %v539, 0
        %vm604 = vcmp.eq.s32.totalorder %v540, 0
        %vm605 = vcmp.eq.s32.totalorder %v541, 0
        %vm606 = vcmp.eq.s32.totalorder %v542, 0
        %vm607 = vcmp.eq.s32.totalorder %v543, 0
        %vm608 = vcmp.eq.s32.totalorder %v544, 0
        %vm609 = vcmp.eq.s32.totalorder %v545, 0
        %vm610 = vcmp.eq.s32.totalorder %v546, 0
        %vm611 = vcmp.eq.s32.totalorder %v547, 0
        %vm612 = vcmp.eq.s32.totalorder %v548, 0
        %vm613 = vcmp.eq.s32.totalorder %v549, 0
        %v614 = vld [vmem:[#allocation4] ss:$4 sm:$0x3]
        %v616 = vperm.slane %v614, 0
        %v617 = vperm.slane %v614, 1
        %v620 = vsel %vm550, %v616, 0.0
        %v621 = vsel %vm551, %v617, 0.0
        %v622 = vsel %vm552, %v616, 0.0
        %v623 = vsel %vm553, %v617, 0.0
        %v624 = vsel %vm554, %v616, 0.0
        %v625 = vsel %vm555, %v617, 0.0
        %v626 = vsel %vm556, %v616, 0.0
        %v627 = vsel %vm557, %v617, 0.0
        %v628 = vsel %vm558, %v616, 0.0
        %v629 = vsel %vm559, %v617, 0.0
        %v630 = vsel %vm560, %v616, 0.0
        %v631 = vsel %vm561, %v617, 0.0
        %v632 = vsel %vm562, %v616, 0.0
        %v633 = vsel %vm563, %v617, 0.0
        %v634 = vsel %vm564, %v616, 0.0
        %v635 = vsel %vm565, %v617, 0.0
        %v636 = vsel %vm566, %v616, 0.0
        %v637 = vsel %vm567, %v617, 0.0
        %v638 = vsel %vm568, %v616, 0.0
        %v639 = vsel %vm569, %v617, 0.0
        %v640 = vsel %vm570, %v616, 0.0
        %v641 = vsel %vm571, %v617, 0.0
        %v642 = vsel %vm572, %v616, 0.0
        %v643 = vsel %vm573, %v617, 0.0
        %v644 = vsel %vm574, %v616, 0.0
        %v645 = vsel %vm575, %v617, 0.0
        %v646 = vsel %vm576, %v616, 0.0
        %v647 = vsel %vm577, %v617, 0.0
        %v648 = vsel %vm578, %v616, 0.0
        %v649 = vsel %vm579, %v617, 0.0
        %v650 = vsel %vm580, %v616, 0.0
        %v651 = vsel %vm581, %v617, 0.0
        %v652 = vsel %vm582, %v616, 0.0
        %v653 = vsel %vm583, %v617, 0.0
        %v654 = vsel %vm584, %v616, 0.0
        %v655 = vsel %vm585, %v617, 0.0
        %v656 = vsel %vm586, %v616, 0.0
        %v657 = vsel %vm587, %v617, 0.0
        %v658 = vsel %vm588, %v616, 0.0
        %v659 = vsel %vm589, %v617, 0.0
        %v660 = vsel %vm590, %v616, 0.0
        %v661 = vsel %vm591, %v617, 0.0
        %v662 = vsel %vm592, %v616, 0.0
        %v663 = vsel %vm593, %v617, 0.0
        %v664 = vsel %vm594, %v616, 0.0
        %v665 = vsel %vm595, %v617, 0.0
        %v666 = vsel %vm596, %v616, 0.0
        %v667 = vsel %vm597, %v617, 0.0
        %v668 = vsel %vm598, %v616, 0.0
        %v669 = vsel %vm599, %v617, 0.0
        %v670 = vsel %vm600, %v616, 0.0
        %v671 = vsel %vm601, %v617, 0.0
        %v672 = vsel %vm602, %v616, 0.0
        %v673 = vsel %vm603, %v617, 0.0
        %v674 = vsel %vm604, %v616, 0.0
        %v675 = vsel %vm605, %v617, 0.0
        %v676 = vsel %vm606, %v616, 0.0
        %v677 = vsel %vm607, %v617, 0.0
        %v678 = vsel %vm608, %v616, 0.0
        %v679 = vsel %vm609, %v617, 0.0
        %v680 = vsel %vm610, %v616, 0.0
        %v681 = vsel %vm611, %v617, 0.0
        %v682 = vsel %vm612, %v616, 0.0
        %v683 = vsel %vm613, %v617, 0.0
        %vm684 = vcmp.eq.s32.totalorder %v486, 1
        %vm685 = vcmp.eq.s32.totalorder %v487, 1
        %vm686 = vcmp.eq.s32.totalorder %v488, 1
        %vm687 = vcmp.eq.s32.totalorder %v489, 1
        %vm688 = vcmp.eq.s32.totalorder %v490, 1
        %vm689 = vcmp.eq.s32.totalorder %v491, 1
        %vm690 = vcmp.eq.s32.totalorder %v492, 1
        %vm691 = vcmp.eq.s32.totalorder %v493, 1
        %vm692 = vcmp.eq.s32.totalorder %v494, 1
        %vm693 = vcmp.eq.s32.totalorder %v495, 1
        %vm694 = vcmp.eq.s32.totalorder %v496, 1
        %vm695 = vcmp.eq.s32.totalorder %v497, 1
        %vm696 = vcmp.eq.s32.totalorder %v498, 1
        %vm697 = vcmp.eq.s32.totalorder %v499, 1
        %vm698 = vcmp.eq.s32.totalorder %v500, 1
        %vm699 = vcmp.eq.s32.totalorder %v501, 1
        %vm700 = vcmp.eq.s32.totalorder %v502, 1
        %vm701 = vcmp.eq.s32.totalorder %v503, 1
        %vm702 = vcmp.eq.s32.totalorder %v504, 1
        %vm703 = vcmp.eq.s32.totalorder %v505, 1
        %vm704 = vcmp.eq.s32.totalorder %v506, 1
        %vm705 = vcmp.eq.s32.totalorder %v507, 1
        %vm706 = vcmp.eq.s32.totalorder %v508, 1
        %vm707 = vcmp.eq.s32.totalorder %v509, 1
        %vm708 = vcmp.eq.s32.totalorder %v510, 1
        %vm709 = vcmp.eq.s32.totalorder %v511, 1
        %vm710 = vcmp.eq.s32.totalorder %v512, 1
        %vm711 = vcmp.eq.s32.totalorder %v513, 1
        %vm712 = vcmp.eq.s32.totalorder %v514, 1
        %vm713 = vcmp.eq.s32.totalorder %v515, 1
        %vm714 = vcmp.eq.s32.totalorder %v516, 1
        %vm715 = vcmp.eq.s32.totalorder %v517, 1
        %vm716 = vcmp.eq.s32.totalorder %v518, 1
        %vm717 = vcmp.eq.s32.totalorder %v519, 1
        %vm718 = vcmp.eq.s32.totalorder %v520, 1
        %vm719 = vcmp.eq.s32.totalorder %v521, 1
        %vm720 = vcmp.eq.s32.totalorder %v522, 1
        %vm721 = vcmp.eq.s32.totalorder %v523, 1
        %vm722 = vcmp.eq.s32.totalorder %v524, 1
        %vm723 = vcmp.eq.s32.totalorder %v525, 1
        %vm724 = vcmp.eq.s32.totalorder %v526, 1
        %vm725 = vcmp.eq.s32.totalorder %v527, 1
        %vm726 = vcmp.eq.s32.totalorder %v528, 1
        %vm727 = vcmp.eq.s32.totalorder %v529, 1
        %vm728 = vcmp.eq.s32.totalorder %v530, 1
        %vm729 = vcmp.eq.s32.totalorder %v531, 1
        %vm730 = vcmp.eq.s32.totalorder %v532, 1
        %vm731 = vcmp.eq.s32.totalorder %v533, 1
        %vm732 = vcmp.eq.s32.totalorder %v534, 1
        %vm733 = vcmp.eq.s32.totalorder %v535, 1
        %vm734 = vcmp.eq.s32.totalorder %v536, 1
        %vm735 = vcmp.eq.s32.totalorder %v537, 1
        %vm736 = vcmp.eq.s32.totalorder %v538, 1
        %vm737 = vcmp.eq.s32.totalorder %v539, 1
        %vm738 = vcmp.eq.s32.totalorder %v540, 1
        %vm739 = vcmp.eq.s32.totalorder %v541, 1
        %vm740 = vcmp.eq.s32.totalorder %v542, 1
        %vm741 = vcmp.eq.s32.totalorder %v543, 1
        %vm742 = vcmp.eq.s32.totalorder %v544, 1
        %vm743 = vcmp.eq.s32.totalorder %v545, 1
        %vm744 = vcmp.eq.s32.totalorder %v546, 1
        %vm745 = vcmp.eq.s32.totalorder %v547, 1
        %vm746 = vcmp.eq.s32.totalorder %v548, 1
        %vm747 = vcmp.eq.s32.totalorder %v549, 1
        %s748 = scalar_lea.vmem [#allocation4], 1
        %v749 = vld [vmem:[%s748] ss:$4 sm:$0x3]
        %v751 = vperm.slane %v749, 0
        %v752 = vperm.slane %v749, 1
        %v755 = vsel %vm684, %v751, 0.0
        %v756 = vsel %vm685, %v752, 0.0
        %v757 = vsel %vm686, %v751, 0.0
        %v758 = vsel %vm687, %v752, 0.0
        %v759 = vsel %vm688, %v751, 0.0
        %v760 = vsel %vm689, %v752, 0.0
        %v761 = vsel %vm690, %v751, 0.0
        %v762 = vsel %vm691, %v752, 0.0
        %v763 = vsel %vm692, %v751, 0.0
        %v764 = vsel %vm693, %v752, 0.0
        %v765 = vsel %vm694, %v751, 0.0
        %v766 = vsel %vm695, %v752, 0.0
        %v767 = vsel %vm696, %v751, 0.0
        %v768 = vsel %vm697, %v752, 0.0
        %v769 = vsel %vm698, %v751, 0.0
        %v770 = vsel %vm699, %v752, 0.0
        %v771 = vsel %vm700, %v751, 0.0
        %v772 = vsel %vm701, %v752, 0.0
        %v773 = vsel %vm702, %v751, 0.0
        %v774 = vsel %vm703, %v752, 0.0
        %v775 = vsel %vm704, %v751, 0.0
        %v776 = vsel %vm705, %v752, 0.0
        %v777 = vsel %vm706, %v751, 0.0
        %v778 = vsel %vm707, %v752, 0.0
        %v779 = vsel %vm708, %v751, 0.0
        %v780 = vsel %vm709, %v752, 0.0
        %v781 = vsel %vm710, %v751, 0.0
        %v782 = vsel %vm711, %v752, 0.0
        %v783 = vsel %vm712, %v751, 0.0
        %v784 = vsel %vm713, %v752, 0.0
        %v785 = vsel %vm714, %v751, 0.0
        %v786 = vsel %vm715, %v752, 0.0
        %v787 = vsel %vm716, %v751, 0.0
        %v788 = vsel %vm717, %v752, 0.0
        %v789 = vsel %vm718, %v751, 0.0
        %v790 = vsel %vm719, %v752, 0.0
        %v791 = vsel %vm720, %v751, 0.0
        %v792 = vsel %vm721, %v752, 0.0
        %v793 = vsel %vm722, %v751, 0.0
        %v794 = vsel %vm723, %v752, 0.0
        %v795 = vsel %vm724, %v751, 0.0
        %v796 = vsel %vm725, %v752, 0.0
        %v797 = vsel %vm726, %v751, 0.0
        %v798 = vsel %vm727, %v752, 0.0
        %v799 = vsel %vm728, %v751, 0.0
        %v800 = vsel %vm729, %v752, 0.0
        %v801 = vsel %vm730, %v751, 0.0
        %v802 = vsel %vm731, %v752, 0.0
        %v803 = vsel %vm732, %v751, 0.0
        %v804 = vsel %vm733, %v752, 0.0
        %v805 = vsel %vm734, %v751, 0.0
        %v806 = vsel %vm735, %v752, 0.0
        %v807 = vsel %vm736, %v751, 0.0
        %v808 = vsel %vm737, %v752, 0.0
        %v809 = vsel %vm738, %v751, 0.0
        %v810 = vsel %vm739, %v752, 0.0
        %v811 = vsel %vm740, %v751, 0.0
        %v812 = vsel %vm741, %v752, 0.0
        %v813 = vsel %vm742, %v751, 0.0
        %v814 = vsel %vm743, %v752, 0.0
        %v815 = vsel %vm744, %v751, 0.0
        %v816 = vsel %vm745, %v752, 0.0
        %v817 = vsel %vm746, %v751, 0.0
        %v818 = vsel %vm747, %v752, 0.0
        %v819 = vadd.f32 %v620, %v755
        %v820 = vadd.f32 %v621, %v756
        %v821 = vadd.f32 %v622, %v757
        %v822 = vadd.f32 %v623, %v758
        %v823 = vadd.f32 %v624, %v759
        %v824 = vadd.f32 %v625, %v760
        %v825 = vadd.f32 %v626, %v761
        %v826 = vadd.f32 %v627, %v762
        %v827 = vadd.f32 %v628, %v763
        %v828 = vadd.f32 %v629, %v764
        %v829 = vadd.f32 %v630, %v765
        %v830 = vadd.f32 %v631, %v766
        %v831 = vadd.f32 %v632, %v767
        %v832 = vadd.f32 %v633, %v768
        %v833 = vadd.f32 %v634, %v769
        %v834 = vadd.f32 %v635, %v770
        %v835 = vadd.f32 %v636, %v771
        %v836 = vadd.f32 %v637, %v772
        %v837 = vadd.f32 %v638, %v773
        %v838 = vadd.f32 %v639, %v774
        %v839 = vadd.f32 %v640, %v775
        %v840 = vadd.f32 %v641, %v776
        %v841 = vadd.f32 %v642, %v777
        %v842 = vadd.f32 %v643, %v778
        %v843 = vadd.f32 %v644, %v779
        %v844 = vadd.f32 %v645, %v780
        %v845 = vadd.f32 %v646, %v781
        %v846 = vadd.f32 %v647, %v782
        %v847 = vadd.f32 %v648, %v783
        %v848 = vadd.f32 %v649, %v784
        %v849 = vadd.f32 %v650, %v785
        %v850 = vadd.f32 %v651, %v786
        %v851 = vadd.f32 %v652, %v787
        %v852 = vadd.f32 %v653, %v788
        %v853 = vadd.f32 %v654, %v789
        %v854 = vadd.f32 %v655, %v790
        %v855 = vadd.f32 %v656, %v791
        %v856 = vadd.f32 %v657, %v792
        %v857 = vadd.f32 %v658, %v793
        %v858 = vadd.f32 %v659, %v794
        %v859 = vadd.f32 %v660, %v795
        %v860 = vadd.f32 %v661, %v796
        %v861 = vadd.f32 %v662, %v797
        %v862 = vadd.f32 %v663, %v798
        %v863 = vadd.f32 %v664, %v799
        %v864 = vadd.f32 %v665, %v800
        %v865 = vadd.f32 %v666, %v801
        %v866 = vadd.f32 %v667, %v802
        %v867 = vadd.f32 %v668, %v803
        %v868 = vadd.f32 %v669, %v804
        %v869 = vadd.f32 %v670, %v805
        %v870 = vadd.f32 %v671, %v806
        %v871 = vadd.f32 %v672, %v807
        %v872 = vadd.f32 %v673, %v808
        %v873 = vadd.f32 %v674, %v809
        %v874 = vadd.f32 %v675, %v810
        %v875 = vadd.f32 %v676, %v811
        %v876 = vadd.f32 %v677, %v812
        %v877 = vadd.f32 %v678, %v813
        %v878 = vadd.f32 %v679, %v814
        %v879 = vadd.f32 %v680, %v815
        %v880 = vadd.f32 %v681, %v816
        %v881 = vadd.f32 %v682, %v817
        %v882 = vadd.f32 %v683, %v818
        %vm883 = vcmp.eq.s32.totalorder %v486, 16
        %vm884 = vcmp.eq.s32.totalorder %v487, 16
        %vm885 = vcmp.eq.s32.totalorder %v488, 16
        %vm886 = vcmp.eq.s32.totalorder %v489, 16
        %vm887 = vcmp.eq.s32.totalorder %v490, 16
        %vm888 = vcmp.eq.s32.totalorder %v491, 16
        %vm889 = vcmp.eq.s32.totalorder %v492, 16
        %vm890 = vcmp.eq.s32.totalorder %v493, 16
        %vm891 = vcmp.eq.s32.totalorder %v494, 16
        %vm892 = vcmp.eq.s32.totalorder %v495, 16
        %vm893 = vcmp.eq.s32.totalorder %v496, 16
        %vm894 = vcmp.eq.s32.totalorder %v497, 16
        %vm895 = vcmp.eq.s32.totalorder %v498, 16
        %vm896 = vcmp.eq.s32.totalorder %v499, 16
        %vm897 = vcmp.eq.s32.totalorder %v500, 16
        %vm898 = vcmp.eq.s32.totalorder %v501, 16
        %vm899 = vcmp.eq.s32.totalorder %v502, 16
        %vm900 = vcmp.eq.s32.totalorder %v503, 16
        %vm901 = vcmp.eq.s32.totalorder %v504, 16
        %vm902 = vcmp.eq.s32.totalorder %v505, 16
        %vm903 = vcmp.eq.s32.totalorder %v506, 16
        %vm904 = vcmp.eq.s32.totalorder %v507, 16
        %vm905 = vcmp.eq.s32.totalorder %v508, 16
        %vm906 = vcmp.eq.s32.totalorder %v509, 16
        %vm907 = vcmp.eq.s32.totalorder %v510, 16
        %vm908 = vcmp.eq.s32.totalorder %v511, 16
        %vm909 = vcmp.eq.s32.totalorder %v512, 16
        %vm910 = vcmp.eq.s32.totalorder %v513, 16
        %vm911 = vcmp.eq.s32.totalorder %v514, 16
        %vm912 = vcmp.eq.s32.totalorder %v515, 16
        %vm913 = vcmp.eq.s32.totalorder %v516, 16
        %vm914 = vcmp.eq.s32.totalorder %v517, 16
        %vm915 = vcmp.eq.s32.totalorder %v518, 16
        %vm916 = vcmp.eq.s32.totalorder %v519, 16
        %vm917 = vcmp.eq.s32.totalorder %v520, 16
        %vm918 = vcmp.eq.s32.totalorder %v521, 16
        %vm919 = vcmp.eq.s32.totalorder %v522, 16
        %vm920 = vcmp.eq.s32.totalorder %v523, 16
        %vm921 = vcmp.eq.s32.totalorder %v524, 16
        %vm922 = vcmp.eq.s32.totalorder %v525, 16
        %vm923 = vcmp.eq.s32.totalorder %v526, 16
        %vm924 = vcmp.eq.s32.totalorder %v527, 16
        %vm925 = vcmp.eq.s32.totalorder %v528, 16
        %vm926 = vcmp.eq.s32.totalorder %v529, 16
        %vm927 = vcmp.eq.s32.totalorder %v530, 16
        %vm928 = vcmp.eq.s32.totalorder %v531, 16
        %vm929 = vcmp.eq.s32.totalorder %v532, 16
        %vm930 = vcmp.eq.s32.totalorder %v533, 16
        %vm931 = vcmp.eq.s32.totalorder %v534, 16
        %vm932 = vcmp.eq.s32.totalorder %v535, 16
        %vm933 = vcmp.eq.s32.totalorder %v536, 16
        %vm934 = vcmp.eq.s32.totalorder %v537, 16
        %vm935 = vcmp.eq.s32.totalorder %v538, 16
        %vm936 = vcmp.eq.s32.totalorder %v539, 16
        %vm937 = vcmp.eq.s32.totalorder %v540, 16
        %vm938 = vcmp.eq.s32.totalorder %v541, 16
        %vm939 = vcmp.eq.s32.totalorder %v542, 16
        %vm940 = vcmp.eq.s32.totalorder %v543, 16
        %vm941 = vcmp.eq.s32.totalorder %v544, 16
        %vm942 = vcmp.eq.s32.totalorder %v545, 16
        %vm943 = vcmp.eq.s32.totalorder %v546, 16
        %vm944 = vcmp.eq.s32.totalorder %v547, 16
        %vm945 = vcmp.eq.s32.totalorder %v548, 16
        %vm946 = vcmp.eq.s32.totalorder %v549, 16
        %s947 = scalar_lea.vmem [#allocation4], 2
        %v948 = vld [vmem:[%s947] ss:$4 sm:$0x3]
        %v950 = vperm.slane %v948, 0
        %v951 = vperm.slane %v948, 1
        %v954 = vsel %vm883, %v950, 0.0
        %v955 = vsel %vm884, %v951, 0.0
        %v956 = vsel %vm885, %v950, 0.0
        %v957 = vsel %vm886, %v951, 0.0
        %v958 = vsel %vm887, %v950, 0.0
        %v959 = vsel %vm888, %v951, 0.0
        %v960 = vsel %vm889, %v950, 0.0
        %v961 = vsel %vm890, %v951, 0.0
        %v962 = vsel %vm891, %v950, 0.0
        %v963 = vsel %vm892, %v951, 0.0
        %v964 = vsel %vm893, %v950, 0.0
        %v965 = vsel %vm894, %v951, 0.0
        %v966 = vsel %vm895, %v950, 0.0
        %v967 = vsel %vm896, %v951, 0.0
        %v968 = vsel %vm897, %v950, 0.0
        %v969 = vsel %vm898, %v951, 0.0
        %v970 = vsel %vm899, %v950, 0.0
        %v971 = vsel %vm900, %v951, 0.0
        %v972 = vsel %vm901, %v950, 0.0
        %v973 = vsel %vm902, %v951, 0.0
        %v974 = vsel %vm903, %v950, 0.0
        %v975 = vsel %vm904, %v951, 0.0
        %v976 = vsel %vm905, %v950, 0.0
        %v977 = vsel %vm906, %v951, 0.0
        %v978 = vsel %vm907, %v950, 0.0
        %v979 = vsel %vm908, %v951, 0.0
        %v980 = vsel %vm909, %v950, 0.0
        %v981 = vsel %vm910, %v951, 0.0
        %v982 = vsel %vm911, %v950, 0.0
        %v983 = vsel %vm912, %v951, 0.0
        %v984 = vsel %vm913, %v950, 0.0
        %v985 = vsel %vm914, %v951, 0.0
        %v986 = vsel %vm915, %v950, 0.0
        %v987 = vsel %vm916, %v951, 0.0
        %v988 = vsel %vm917, %v950, 0.0
        %v989 = vsel %vm918, %v951, 0.0
        %v990 = vsel %vm919, %v950, 0.0
        %v991 = vsel %vm920, %v951, 0.0
        %v992 = vsel %vm921, %v950, 0.0
        %v993 = vsel %vm922, %v951, 0.0
        %v994 = vsel %vm923, %v950, 0.0
        %v995 = vsel %vm924, %v951, 0.0
        %v996 = vsel %vm925, %v950, 0.0
        %v997 = vsel %vm926, %v951, 0.0
        %v998 = vsel %vm927, %v950, 0.0
        %v999 = vsel %vm928, %v951, 0.0
        %v1000 = vsel %vm929, %v950, 0.0
        %v1001 = vsel %vm930, %v951, 0.0
        %v1002 = vsel %vm931, %v950, 0.0
        %v1003 = vsel %vm932, %v951, 0.0
        %v1004 = vsel %vm933, %v950, 0.0
        %v1005 = vsel %vm934, %v951, 0.0
        %v1006 = vsel %vm935, %v950, 0.0
        %v1007 = vsel %vm936, %v951, 0.0
        %v1008 = vsel %vm937, %v950, 0.0
        %v1009 = vsel %vm938, %v951, 0.0
        %v1010 = vsel %vm939, %v950, 0.0
        %v1011 = vsel %vm940, %v951, 0.0
        %v1012 = vsel %vm941, %v950, 0.0
        %v1013 = vsel %vm942, %v951, 0.0
        %v1014 = vsel %vm943, %v950, 0.0
        %v1015 = vsel %vm944, %v951, 0.0
        %v1016 = vsel %vm945, %v950, 0.0
        %v1017 = vsel %vm946, %v951, 0.0
        %v1018 = vadd.f32 %v819, %v954
        %v1019 = vadd.f32 %v820, %v955
        %v1020 = vadd.f32 %v821, %v956
        %v1021 = vadd.f32 %v822, %v957
        %v1022 = vadd.f32 %v823, %v958
        %v1023 = vadd.f32 %v824, %v959
        %v1024 = vadd.f32 %v825, %v960
        %v1025 = vadd.f32 %v826, %v961
        %v1026 = vadd.f32 %v827, %v962
        %v1027 = vadd.f32 %v828, %v963
        %v1028 = vadd.f32 %v829, %v964
        %v1029 = vadd.f32 %v830, %v965
        %v1030 = vadd.f32 %v831, %v966
        %v1031 = vadd.f32 %v832, %v967
        %v1032 = vadd.f32 %v833, %v968
        %v1033 = vadd.f32 %v834, %v969
        %v1034 = vadd.f32 %v835, %v970
        %v1035 = vadd.f32 %v836, %v971
        %v1036 = vadd.f32 %v837, %v972
        %v1037 = vadd.f32 %v838, %v973
        %v1038 = vadd.f32 %v839, %v974
        %v1039 = vadd.f32 %v840, %v975
        %v1040 = vadd.f32 %v841, %v976
        %v1041 = vadd.f32 %v842, %v977
        %v1042 = vadd.f32 %v843, %v978
        %v1043 = vadd.f32 %v844, %v979
        %v1044 = vadd.f32 %v845, %v980
        %v1045 = vadd.f32 %v846, %v981
        %v1046 = vadd.f32 %v847, %v982
        %v1047 = vadd.f32 %v848, %v983
        %v1048 = vadd.f32 %v849, %v984
        %v1049 = vadd.f32 %v850, %v985
        %v1050 = vadd.f32 %v851, %v986
        %v1051 = vadd.f32 %v852, %v987
        %v1052 = vadd.f32 %v853, %v988
        %v1053 = vadd.f32 %v854, %v989
        %v1054 = vadd.f32 %v855, %v990
        %v1055 = vadd.f32 %v856, %v991
        %v1056 = vadd.f32 %v857, %v992
        %v1057 = vadd.f32 %v858, %v993
        %v1058 = vadd.f32 %v859, %v994
        %v1059 = vadd.f32 %v860, %v995
        %v1060 = vadd.f32 %v861, %v996
        %v1061 = vadd.f32 %v862, %v997
        %v1062 = vadd.f32 %v863, %v998
        %v1063 = vadd.f32 %v864, %v999
        %v1064 = vadd.f32 %v865, %v1000
        %v1065 = vadd.f32 %v866, %v1001
        %v1066 = vadd.f32 %v867, %v1002
        %v1067 = vadd.f32 %v868, %v1003
        %v1068 = vadd.f32 %v869, %v1004
        %v1069 = vadd.f32 %v870, %v1005
        %v1070 = vadd.f32 %v871, %v1006
        %v1071 = vadd.f32 %v872, %v1007
        %v1072 = vadd.f32 %v873, %v1008
        %v1073 = vadd.f32 %v874, %v1009
        %v1074 = vadd.f32 %v875, %v1010
        %v1075 = vadd.f32 %v876, %v1011
        %v1076 = vadd.f32 %v877, %v1012
        %v1077 = vadd.f32 %v878, %v1013
        %v1078 = vadd.f32 %v879, %v1014
        %v1079 = vadd.f32 %v880, %v1015
        %v1080 = vadd.f32 %v881, %v1016
        %v1081 = vadd.f32 %v882, %v1017
        %vm1082 = vcmp.eq.s32.totalorder %v486, 17
        %vm1083 = vcmp.eq.s32.totalorder %v487, 17
        %vm1084 = vcmp.eq.s32.totalorder %v488, 17
        %vm1085 = vcmp.eq.s32.totalorder %v489, 17
        %vm1086 = vcmp.eq.s32.totalorder %v490, 17
        %vm1087 = vcmp.eq.s32.totalorder %v491, 17
        %vm1088 = vcmp.eq.s32.totalorder %v492, 17
        %vm1089 = vcmp.eq.s32.totalorder %v493, 17
        %vm1090 = vcmp.eq.s32.totalorder %v494, 17
        %vm1091 = vcmp.eq.s32.totalorder %v495, 17
        %vm1092 = vcmp.eq.s32.totalorder %v496, 17
        %vm1093 = vcmp.eq.s32.totalorder %v497, 17
        %vm1094 = vcmp.eq.s32.totalorder %v498, 17
        %vm1095 = vcmp.eq.s32.totalorder %v499, 17
        %vm1096 = vcmp.eq.s32.totalorder %v500, 17
        %vm1097 = vcmp.eq.s32.totalorder %v501, 17
        %vm1098 = vcmp.eq.s32.totalorder %v502, 17
        %vm1099 = vcmp.eq.s32.totalorder %v503, 17
        %vm1100 = vcmp.eq.s32.totalorder %v504, 17
        %vm1101 = vcmp.eq.s32.totalorder %v505, 17
        %vm1102 = vcmp.eq.s32.totalorder %v506, 17
        %vm1103 = vcmp.eq.s32.totalorder %v507, 17
        %vm1104 = vcmp.eq.s32.totalorder %v508, 17
        %vm1105 = vcmp.eq.s32.totalorder %v509, 17
        %vm1106 = vcmp.eq.s32.totalorder %v510, 17
        %vm1107 = vcmp.eq.s32.totalorder %v511, 17
        %vm1108 = vcmp.eq.s32.totalorder %v512, 17
        %vm1109 = vcmp.eq.s32.totalorder %v513, 17
        %vm1110 = vcmp.eq.s32.totalorder %v514, 17
        %vm1111 = vcmp.eq.s32.totalorder %v515, 17
        %vm1112 = vcmp.eq.s32.totalorder %v516, 17
        %vm1113 = vcmp.eq.s32.totalorder %v517, 17
        %vm1114 = vcmp.eq.s32.totalorder %v518, 17
        %vm1115 = vcmp.eq.s32.totalorder %v519, 17
        %vm1116 = vcmp.eq.s32.totalorder %v520, 17
        %vm1117 = vcmp.eq.s32.totalorder %v521, 17
        %vm1118 = vcmp.eq.s32.totalorder %v522, 17
        %vm1119 = vcmp.eq.s32.totalorder %v523, 17
        %vm1120 = vcmp.eq.s32.totalorder %v524, 17
        %vm1121 = vcmp.eq.s32.totalorder %v525, 17
        %vm1122 = vcmp.eq.s32.totalorder %v526, 17
        %vm1123 = vcmp.eq.s32.totalorder %v527, 17
        %vm1124 = vcmp.eq.s32.totalorder %v528, 17
        %vm1125 = vcmp.eq.s32.totalorder %v529, 17
        %vm1126 = vcmp.eq.s32.totalorder %v530, 17
        %vm1127 = vcmp.eq.s32.totalorder %v531, 17
        %vm1128 = vcmp.eq.s32.totalorder %v532, 17
        %vm1129 = vcmp.eq.s32.totalorder %v533, 17
        %vm1130 = vcmp.eq.s32.totalorder %v534, 17
        %vm1131 = vcmp.eq.s32.totalorder %v535, 17
        %vm1132 = vcmp.eq.s32.totalorder %v536, 17
        %vm1133 = vcmp.eq.s32.totalorder %v537, 17
        %vm1134 = vcmp.eq.s32.totalorder %v538, 17
        %vm1135 = vcmp.eq.s32.totalorder %v539, 17
        %vm1136 = vcmp.eq.s32.totalorder %v540, 17
        %vm1137 = vcmp.eq.s32.totalorder %v541, 17
        %vm1138 = vcmp.eq.s32.totalorder %v542, 17
        %vm1139 = vcmp.eq.s32.totalorder %v543, 17
        %vm1140 = vcmp.eq.s32.totalorder %v544, 17
        %vm1141 = vcmp.eq.s32.totalorder %v545, 17
        %vm1142 = vcmp.eq.s32.totalorder %v546, 17
        %vm1143 = vcmp.eq.s32.totalorder %v547, 17
        %vm1144 = vcmp.eq.s32.totalorder %v548, 17
        %vm1145 = vcmp.eq.s32.totalorder %v549, 17
        %s1146 = scalar_lea.vmem [#allocation4], 3
        %v1147 = vld [vmem:[%s1146] ss:$4 sm:$0x3]
        %v1149 = vperm.slane %v1147, 0
        %v1150 = vperm.slane %v1147, 1
        %v1153 = vsel %vm1082, %v1149, 0.0
        %v1154 = vsel %vm1083, %v1150, 0.0
        %v1155 = vsel %vm1084, %v1149, 0.0
        %v1156 = vsel %vm1085, %v1150, 0.0
        %v1157 = vsel %vm1086, %v1149, 0.0
        %v1158 = vsel %vm1087, %v1150, 0.0
        %v1159 = vsel %vm1088, %v1149, 0.0
        %v1160 = vsel %vm1089, %v1150, 0.0
        %v1161 = vsel %vm1090, %v1149, 0.0
        %v1162 = vsel %vm1091, %v1150, 0.0
        %v1163 = vsel %vm1092, %v1149, 0.0
        %v1164 = vsel %vm1093, %v1150, 0.0
        %v1165 = vsel %vm1094, %v1149, 0.0
        %v1166 = vsel %vm1095, %v1150, 0.0
        %v1167 = vsel %vm1096, %v1149, 0.0
        %v1168 = vsel %vm1097, %v1150, 0.0
        %v1169 = vsel %vm1098, %v1149, 0.0
        %v1170 = vsel %vm1099, %v1150, 0.0
        %v1171 = vsel %vm1100, %v1149, 0.0
        %v1172 = vsel %vm1101, %v1150, 0.0
        %v1173 = vsel %vm1102, %v1149, 0.0
        %v1174 = vsel %vm1103, %v1150, 0.0
        %v1175 = vsel %vm1104, %v1149, 0.0
        %v1176 = vsel %vm1105, %v1150, 0.0
        %v1177 = vsel %vm1106, %v1149, 0.0
        %v1178 = vsel %vm1107, %v1150, 0.0
        %v1179 = vsel %vm1108, %v1149, 0.0
        %v1180 = vsel %vm1109, %v1150, 0.0
        %v1181 = vsel %vm1110, %v1149, 0.0
        %v1182 = vsel %vm1111, %v1150, 0.0
        %v1183 = vsel %vm1112, %v1149, 0.0
        %v1184 = vsel %vm1113, %v1150, 0.0
        %v1185 = vsel %vm1114, %v1149, 0.0
        %v1186 = vsel %vm1115, %v1150, 0.0
        %v1187 = vsel %vm1116, %v1149, 0.0
        %v1188 = vsel %vm1117, %v1150, 0.0
        %v1189 = vsel %vm1118, %v1149, 0.0
        %v1190 = vsel %vm1119, %v1150, 0.0
        %v1191 = vsel %vm1120, %v1149, 0.0
        %v1192 = vsel %vm1121, %v1150, 0.0
        %v1193 = vsel %vm1122, %v1149, 0.0
        %v1194 = vsel %vm1123, %v1150, 0.0
        %v1195 = vsel %vm1124, %v1149, 0.0
        %v1196 = vsel %vm1125, %v1150, 0.0
        %v1197 = vsel %vm1126, %v1149, 0.0
        %v1198 = vsel %vm1127, %v1150, 0.0
        %v1199 = vsel %vm1128, %v1149, 0.0
        %v1200 = vsel %vm1129, %v1150, 0.0
        %v1201 = vsel %vm1130, %v1149, 0.0
        %v1202 = vsel %vm1131, %v1150, 0.0
        %v1203 = vsel %vm1132, %v1149, 0.0
        %v1204 = vsel %vm1133, %v1150, 0.0
        %v1205 = vsel %vm1134, %v1149, 0.0
        %v1206 = vsel %vm1135, %v1150, 0.0
        %v1207 = vsel %vm1136, %v1149, 0.0
        %v1208 = vsel %vm1137, %v1150, 0.0
        %v1209 = vsel %vm1138, %v1149, 0.0
        %v1210 = vsel %vm1139, %v1150, 0.0
        %v1211 = vsel %vm1140, %v1149, 0.0
        %v1212 = vsel %vm1141, %v1150, 0.0
        %v1213 = vsel %vm1142, %v1149, 0.0
        %v1214 = vsel %vm1143, %v1150, 0.0
        %v1215 = vsel %vm1144, %v1149, 0.0
        %v1216 = vsel %vm1145, %v1150, 0.0
        %v1217 = vadd.f32 %v1018, %v1153
        %v1218 = vadd.f32 %v1019, %v1154
        %v1219 = vadd.f32 %v1020, %v1155
        %v1220 = vadd.f32 %v1021, %v1156
        %v1221 = vadd.f32 %v1022, %v1157
        %v1222 = vadd.f32 %v1023, %v1158
        %v1223 = vadd.f32 %v1024, %v1159
        %v1224 = vadd.f32 %v1025, %v1160
        %v1225 = vadd.f32 %v1026, %v1161
        %v1226 = vadd.f32 %v1027, %v1162
        %v1227 = vadd.f32 %v1028, %v1163
        %v1228 = vadd.f32 %v1029, %v1164
        %v1229 = vadd.f32 %v1030, %v1165
        %v1230 = vadd.f32 %v1031, %v1166
        %v1231 = vadd.f32 %v1032, %v1167
        %v1232 = vadd.f32 %v1033, %v1168
        %v1233 = vadd.f32 %v1034, %v1169
        %v1234 = vadd.f32 %v1035, %v1170
        %v1235 = vadd.f32 %v1036, %v1171
        %v1236 = vadd.f32 %v1037, %v1172
        %v1237 = vadd.f32 %v1038, %v1173
        %v1238 = vadd.f32 %v1039, %v1174
        %v1239 = vadd.f32 %v1040, %v1175
        %v1240 = vadd.f32 %v1041, %v1176
        %v1241 = vadd.f32 %v1042, %v1177
        %v1242 = vadd.f32 %v1043, %v1178
        %v1243 = vadd.f32 %v1044, %v1179
        %v1244 = vadd.f32 %v1045, %v1180
        %v1245 = vadd.f32 %v1046, %v1181
        %v1246 = vadd.f32 %v1047, %v1182
        %v1247 = vadd.f32 %v1048, %v1183
        %v1248 = vadd.f32 %v1049, %v1184
        %v1249 = vadd.f32 %v1050, %v1185
        %v1250 = vadd.f32 %v1051, %v1186
        %v1251 = vadd.f32 %v1052, %v1187
        %v1252 = vadd.f32 %v1053, %v1188
        %v1253 = vadd.f32 %v1054, %v1189
        %v1254 = vadd.f32 %v1055, %v1190
        %v1255 = vadd.f32 %v1056, %v1191
        %v1256 = vadd.f32 %v1057, %v1192
        %v1257 = vadd.f32 %v1058, %v1193
        %v1258 = vadd.f32 %v1059, %v1194
        %v1259 = vadd.f32 %v1060, %v1195
        %v1260 = vadd.f32 %v1061, %v1196
        %v1261 = vadd.f32 %v1062, %v1197
        %v1262 = vadd.f32 %v1063, %v1198
        %v1263 = vadd.f32 %v1064, %v1199
        %v1264 = vadd.f32 %v1065, %v1200
        %v1265 = vadd.f32 %v1066, %v1201
        %v1266 = vadd.f32 %v1067, %v1202
        %v1267 = vadd.f32 %v1068, %v1203
        %v1268 = vadd.f32 %v1069, %v1204
        %v1269 = vadd.f32 %v1070, %v1205
        %v1270 = vadd.f32 %v1071, %v1206
        %v1271 = vadd.f32 %v1072, %v1207
        %v1272 = vadd.f32 %v1073, %v1208
        %v1273 = vadd.f32 %v1074, %v1209
        %v1274 = vadd.f32 %v1075, %v1210
        %v1275 = vadd.f32 %v1076, %v1211
        %v1276 = vadd.f32 %v1077, %v1212
        %v1277 = vadd.f32 %v1078, %v1213
        %v1278 = vadd.f32 %v1079, %v1214
        %v1279 = vadd.f32 %v1080, %v1215
        %v1280 = vadd.f32 %v1081, %v1216
        %v1281 = vld [vmem:[%s289] sm:$0xff]
        %1283 = vst [vmem:[#allocation1] ss:$2 sm:$0xff] %v1281
        %v1284 = vld.sshfl [vmem:[#allocation1] sm:$0xff pattern:$0x75316420]
        %v1285 = vld.sshfl [vmem:[#allocation1 + $0x8] sm:$0xff pattern:$0x75316420]
        %1288 = vmatpush.msra.mxu0 %v1247
        %1289 = vmatpush.msra.mxu0 %v1245
        %1290 = vmatpush.msra.mxu0 %v1243
        %1291 = vmatpush.msra.mxu0 %v1241
        %1292 = vmatpush.msra.mxu0 %v1239
        %1293 = vmatpush.msra.mxu0 %v1237
        %1294 = vmatpush.msra.mxu0 %v1235
        %1295 = vmatpush.msra.mxu0 %v1233
        %1296 = vmatpush.msra.mxu0 %v1231
        %1297 = vmatpush.msra.mxu0 %v1229
        %1298 = vmatpush.msra.mxu0 %v1227
        %1299 = vmatpush.msra.mxu0 %v1225
        %1300 = vmatpush.msra.mxu0 %v1223
        %1301 = vmatpush.msra.mxu0 %v1221
        %1302 = vmatpush.msra.mxu0 %v1219
        %1303 = vmatpush.msra.mxu0 %v1217
        %1304 = vmatmul.f32.gmra.mxu0 %v1284
        %v1305 = vpop.f32.mrf.mxu0
        %v1306 = vadd.f32 0.0, %v1305
        %1307 = vdwg.mxu0
        %1308 = vmatpush.msra.mxu0 %v1279
        %1309 = vmatpush.msra.mxu0 %v1277
        %1310 = vmatpush.msra.mxu0 %v1275
        %1311 = vmatpush.msra.mxu0 %v1273
        %1312 = vmatpush.msra.mxu0 %v1271
        %1313 = vmatpush.msra.mxu0 %v1269
        %1314 = vmatpush.msra.mxu0 %v1267
        %1315 = vmatpush.msra.mxu0 %v1265
        %1316 = vmatpush.msra.mxu0 %v1263
        %1317 = vmatpush.msra.mxu0 %v1261
        %1318 = vmatpush.msra.mxu0 %v1259
        %1319 = vmatpush.msra.mxu0 %v1257
        %1320 = vmatpush.msra.mxu0 %v1255
        %1321 = vmatpush.msra.mxu0 %v1253
        %1322 = vmatpush.msra.mxu0 %v1251
        %1323 = vmatpush.msra.mxu0 %v1249
        %1324 = vmatmul.f32.gmra.mxu0 %v1285
        %v1325 = vpop.f32.mrf.mxu0
        %v1326 = vadd.f32 %v1306, %v1325
        %1327 = vdwg.mxu0
        %1328 = vmatpush.msra.mxu0 %v1248
        %1329 = vmatpush.msra.mxu0 %v1246
        %1330 = vmatpush.msra.mxu0 %v1244
        %1331 = vmatpush.msra.mxu0 %v1242
        %1332 = vmatpush.msra.mxu0 %v1240
        %1333 = vmatpush.msra.mxu0 %v1238
        %1334 = vmatpush.msra.mxu0 %v1236
        %1335 = vmatpush.msra.mxu0 %v1234
        %1336 = vmatpush.msra.mxu0 %v1232
        %1337 = vmatpush.msra.mxu0 %v1230
        %1338 = vmatpush.msra.mxu0 %v1228
        %1339 = vmatpush.msra.mxu0 %v1226
        %1340 = vmatpush.msra.mxu0 %v1224
        %1341 = vmatpush.msra.mxu0 %v1222
        %1342 = vmatpush.msra.mxu0 %v1220
        %1343 = vmatpush.msra.mxu0 %v1218
        %1344 = vmatmul.f32.gmra.mxu0 %v1284
        %v1345 = vpop.f32.mrf.mxu0
        %v1346 = vadd.f32 0.0, %v1345
        %1347 = vdwg.mxu0
        %1348 = vmatpush.msra.mxu0 %v1280
        %1349 = vmatpush.msra.mxu0 %v1278
        %1350 = vmatpush.msra.mxu0 %v1276
        %1351 = vmatpush.msra.mxu0 %v1274
        %1352 = vmatpush.msra.mxu0 %v1272
        %1353 = vmatpush.msra.mxu0 %v1270
        %1354 = vmatpush.msra.mxu0 %v1268
        %1355 = vmatpush.msra.mxu0 %v1266
        %1356 = vmatpush.msra.mxu0 %v1264
        %1357 = vmatpush.msra.mxu0 %v1262
        %1358 = vmatpush.msra.mxu0 %v1260
        %1359 = vmatpush.msra.mxu0 %v1258
        %1360 = vmatpush.msra.mxu0 %v1256
        %1361 = vmatpush.msra.mxu0 %v1254
        %1362 = vmatpush.msra.mxu0 %v1252
        %1363 = vmatpush.msra.mxu0 %v1250
        %1364 = vmatmul.f32.gmra.mxu0 %v1285
        %v1365 = vpop.f32.mrf.mxu0
        %v1366 = vadd.f32 %v1346, %v1365
        %1367 = vdwg.mxu0
        // Predicated region
        $region57: #{tpu_custom_call.1} parent=39 // pred_check
          %p1368 = pneg %p338
        $region58: #{tpu_custom_call.1} parent=39 // pred_check_branch
          %1370 = sbr.rel (%p1368) target = $region60
        $region59: #{tpu_custom_call.1} parent=39 // pred_region
          %v1373 = vrot.slane %v1366, 4
          %vm1374 = vcmask 1043456
          %v1375 = vsel %vm1374, %v1326, %v1373
          %1377 = vst [vmem:[#allocation2] sm:$0xff] %v1375
        $region60: #{tpu_custom_call.1} parent=39 // pred_fallthru
          _
        %p1378 = scmp.gt.s32.totalorder %s31, 0
        // Predicated region
        $region61: #{tpu_custom_call.1} parent=39 // pred_check
          %p1379 = pneg %p1378
        $region62: #{tpu_custom_call.1} parent=39 // pred_check_branch
          %1381 = sbr.rel (%p1379) target = $region64
        $region63: #{tpu_custom_call.1} parent=39 // pred_region
          %v1382 = vld [vmem:[#allocation2] sm:$0xff]
          %v1385 = vrot.slane %v1366, 4
          %vm1386 = vcmask 1043456
          %v1387 = vsel %vm1386, %v1326, %v1385
          %v1389 = vadd.f32 %v1382, %v1387
          %1390 = vst [vmem:[#allocation2] sm:$0xff] %v1389
        $region64: #{tpu_custom_call.1} parent=39 // pred_fallthru
          _
        // Predicated region
        $region65: #{tpu_custom_call.1} parent=39 // pred_check
          %p1391 = pneg %p338
        $region66: #{tpu_custom_call.1} parent=39 // pred_check_branch
          %1393 = sbr.rel (%p1391) target = $region68
        $region67: #{tpu_custom_call.1} parent=39 // pred_region
          %v1394 = vld [vmem:[%s279] sm:$0xff]
          %v1395 = vld [vmem:[#allocation2] sm:$0xff]
          %v1396 = vsub.f32 %v1394, %v1395
          %v1397 = vand.u32 2147483647, %v1396
          %1399 = vst [vmem:[#allocation1] ss:$2 sm:$0xff] %v1397
          %v1400 = vld.sshfl [vmem:[#allocation1] sm:$0xff pattern:$0x75316420]
          %v1401 = vld.sshfl [vmem:[#allocation1 + $0x8] sm:$0xff pattern:$0x75316420]
          %vm1404 = vcmask 1043456
          %v1405 = vsel %vm1404, %v1400, 0.0
          %v1406 = vrot.slane %v1405, 4
          %v1407 = vadd.f32 %v1405, %v1406
          %v1408 = vrot.slane %v1407, 2
          %v1409 = vadd.f32 %v1407, %v1408
          %v1410 = vrot.slane %v1409, 1
          %v1411 = vadd.f32 %v1409, %v1410
          %v1412 = vsel %vm1404, %v1401, 0.0
          %v1413 = vrot.slane %v1412, 4
          %v1414 = vadd.f32 %v1412, %v1413
          %v1415 = vrot.slane %v1414, 2
          %v1416 = vadd.f32 %v1414, %v1415
          %v1417 = vrot.slane %v1416, 1
          %v1418 = vadd.f32 %v1416, %v1417
          %s1419 = sld [smem:[#allocation5]]
          %v1420 = vstv %s1419
          %v1421 = vmul.f32 %v1420, %v1411
          %v1422 = vmul.f32 %v1420, %v1418
          %v1425 = vrot.slane %v1422, 7
          %vm1426 = vcmask 1040384
          %v1427 = vsel %vm1426, %v1421, %v1425
          %v1429 = vlaneseq
          %vm1430 = vcmp.ge.s32.totalorder %v1429, 0
          %vm1431 = vcmp.lt.s32.totalorder %v1429, 256
          %vm1432 = vmand %vm1430, %vm1431
          %1433 = vst.msk [vmem:[%s336] sm:$0x3] %vm1432, %v1427
        $region68: #{tpu_custom_call.1} parent=39 // pred_fallthru
          _
        %s1434 = sand.u32 %s168, 1
        %s1435 = scalar_lea.sflag [#allocation8], %s1434
        %s1436 = sand.u32 %s168, 1
        %s1437 = smul.addr %s1436, 2
        %s1438 = scalar_lea.vmem [#allocation12], %s1437
        // Predicated region
        $region69: #{tpu_custom_call.1} parent=39 // pred_check
          %p1439 = pneg %p178
        $region70: #{tpu_custom_call.1} parent=39 // pred_check_branch
          %1441 = sbr.rel (%p1439) target = $region72
        $region71: #{tpu_custom_call.1} parent=39 // pred_region
          %1443 = vsyncadd %s1435, 0
          %s1444 = smul.addr %s30, 2
          %s1445 = scalar_lea.hbm %s5, %s1444
          %s1447 = sshll.u32 %s1438, 4
          %s1448 = int_to_ptr.vmem [resolvable:$true] %s1447
          %s1449 = sshll.u32 %s1445, 4
          %s1450 = int_to_ptr.hbm [resolvable:$true] %s1449
          %1452 = dma.vmem_to_hbm [thread:$0]  %s1448, 32, %s1450, %s1435
        $region72: #{tpu_custom_call.1} parent=39 // pred_fallthru
          _
      $region40: #{tpu_custom_call.1} parent=5 // pred_fallthru
        _
      %p1453 = scmp.le.s32.totalorder 2, %s21
      // Predicated region
      $region73: #{tpu_custom_call.1} parent=5 // pred_check
        %p1454 = pneg %p1453
      $region74: #{tpu_custom_call.1} parent=5 // pred_check_branch
        %1456 = sbr.rel (%p1454) target = $region76
      $region75: #{tpu_custom_call.1} parent=5 // pred_region
        %s1457 = ssub.s32 %s21, 2
        // Predicated region
        $region77: #{tpu_custom_call.1} parent=75 // pred_check
          %p1458 = pneg %p184
        $region78: #{tpu_custom_call.1} parent=75 // pred_check_branch
          %1460 = sbr.rel (%p1458) target = $region80
        $region79: #{tpu_custom_call.1} parent=75 // pred_region
          %s1461 = sand.u32 %s169, 1
          %s1462 = scalar_lea.sflag [#allocation8], %s1461
          %s1463 = sand.u32 %s169, 1
          %s1464 = smul.addr %s1463, 2
          %s1465 = scalar_lea.vmem [#allocation12], %s1464
          %1467 = dma.done %s1462, 32
        $region80: #{tpu_custom_call.1} parent=75 // pred_fallthru
          _
      $region76: #{tpu_custom_call.1} parent=5 // pred_fallthru
        _
    $region6: #{tpu_custom_call.1} parent=1 // loop_footer
      %s25 = sadd.s32 1, %s21
    $region7: #{tpu_custom_call.1} parent=1 // loop_footer_branch
      %20 = sbr.rel target = $region3
    $region8: #{tpu_custom_call.1} parent=1 // loop_exit
      _
    %1468 = vsyncpa [#allocation7], 1
    %s1469 = scalar_lea.sflag [#allocation7], 1
    %1470 = vsyncpa %s1469, 1
    %1471 = vsyncpa [#allocation10], 1
    %s1472 = scalar_lea.sflag [#allocation10], 1
    %1473 = vsyncpa %s1472, 1
    %1474 = vsyncpa [#allocation8], 1
    %s1475 = scalar_lea.sflag [#allocation8], 1
    %1476 = vsyncpa %s1475, 1

</llo_original>
